<compile_context>
chip_gen: v7x
topology: tpu7x:2x2x1
jax: 0.10.0
libtpu: 0.0.40
codegen_flags: <defaults>
</compile_context>

<pallas_src>
import jax
import jax.numpy as jnp
from jax import lax
from jax.experimental import pallas as pl
from jax.experimental.pallas import tpu as pltpu

L = 22          # sequence length (spatial H of the conv)
C_IN = 4        # input channels
C_CONV = 64     # conv channels
HIDDEN = 128    # fc hidden size
OUT = 22        # logical output width
OUT_PAD = 128   # lane-dense output width
BN_EPS = 1e-5


# ---------------------------------------------------------------------------
# Fused kernel: conv stack + MLP, one batch block per grid step
# ---------------------------------------------------------------------------
def _fused_kernel(x_ref, w1_ref, b1_ref, w2_ref, b2_ref, w3_ref, b3_ref,
                  fw1_ref, fb1_ref, fw2_ref, fb2_ref, fw3_ref, fb3_ref, o_ref):
    n = x_ref.shape[0]          # L * TB rows (row = l*TB + b_local), static
    tb = n // L                 # static Python int (multiple of 8)
    f32 = jnp.float32
    bf16 = jnp.bfloat16

    # conv_1 + ReLU: input was im2col'd offline -> single dot, no shifts/masks.
    h = jnp.maximum(
        jnp.dot(x_ref[...], w1_ref[...], preferred_element_type=f32)
        + b1_ref[...], 0.0)

    # Single small zero slab used to splice out the l==0 / l==L-1 wrapped rows
    # (replaces the old full-height iota+where edge masks).
    zeros_edge = jnp.zeros((tb, C_CONV), f32)

    def conv3x1_relu(h, wcat_ref, b_ref):
        # One fused (n,64)@(64,192) bf16 dot for all three taps; the per-tap
        # contributions are then shifted by +-tb rows on the OUTPUT slices,
        # with boundary rows zeroed by concatenating a (tb,64) zero slab.
        y = jnp.dot(h.astype(bf16), wcat_ref[...], preferred_element_type=f32)
        y_prev = y[:, 0:C_CONV]                 # tap applied to h[l-1]
        y_mid = y[:, C_CONV:2 * C_CONV]         # tap applied to h[l]
        y_next = y[:, 2 * C_CONV:3 * C_CONV]    # tap applied to h[l+1]
        shift_prev = jnp.concatenate([zeros_edge, y_prev[:n - tb, :]], axis=0)
        shift_next = jnp.concatenate([y_next[tb:, :], zeros_edge], axis=0)
        return jnp.maximum(shift_prev + y_mid + shift_next + b_ref[...], 0.0)

    h = conv3x1_relu(h, w2_ref, b2_ref)
    h = conv3x1_relu(h, w3_ref, b3_ref)          # (L*TB, 64) f32

    # fc_1 (BN1 pre-folded): single batched matmul over the L axis against the
    # offline-permuted (L, 64, 128) weight, then a sum over L. No in-kernel
    # transpose of the activation and no 22-way unrolled dot chain.
    h3 = h.reshape(L, tb, C_CONV).astype(bf16)
    acc = jnp.einsum('lbc,lco->lbo', h3, fw1_ref[...],
                     preferred_element_type=f32)          # (L, TB, 128)
    h1 = jnp.maximum(jnp.sum(acc, axis=0) + fb1_ref[...], 0.0)

    # fc_2 (BN2 pre-folded) + ReLU, then fc_3 into a lane-dense 128-wide output.
    h2 = jnp.maximum(
        jnp.dot(h1.astype(bf16), fw2_ref[...], preferred_element_type=f32)
        + fb2_ref[...], 0.0)
    o_ref[...] = (jnp.dot(h2.astype(bf16), fw3_ref[...],
                          preferred_element_type=f32) + fb3_ref[...])


# ---------------------------------------------------------------------------
# One-time offline weight preprocessing (kernel layout + BN folding + bf16)
# ---------------------------------------------------------------------------
def prepare_params(p):
    f32, bf16 = jnp.float32, jnp.bfloat16

    def bn_fold(g, b, m, v):
        s = g / jnp.sqrt(v + BN_EPS)
        return s, b - m * s

    s1, t1 = bn_fold(p["bn1_g"], p["bn1_b"], p["bn1_m"], p["bn1_v"])
    s2, t2 = bn_fold(p["bn2_g"], p["bn2_b"], p["bn2_m"], p["bn2_v"])

    # conv1 im2col weight: row index k*C_IN + c, i.e. w1[k*4+c, o] = W[o, c, k].
    w1 = jnp.transpose(p["conv1_w"], (2, 1, 0)).reshape(3 * C_IN, C_CONV)

    # conv2/3 fused-tap weight: column index k*C_CONV + o,
    # i.e. wcat[c, k*64+o] = W[o, c, k].
    def fuse_taps(w):  # (Cout, Cin, 3) -> (Cin, 3*Cout)
        return jnp.transpose(w, (1, 2, 0)).reshape(C_CONV, 3 * C_CONV)

    # fc1_w is (H, C*L) with column index c*L + l (PyTorch flatten order).
    # Reorder to (L, C, H) and fold BN1 scale into it.
    fw1 = (p["fc1_w"].T.reshape(C_CONV, L, HIDDEN).transpose(1, 0, 2)
           * s1[None, None, :])
    fb1 = (p["fc1_b"] * s1 + t1).reshape(1, HIDDEN).astype(f32)
    fw2 = p["fc2_w"].T * s2[None, :]
    fb2 = (p["fc2_b"] * s2 + t2).reshape(1, HIDDEN).astype(f32)
    # fc3 padded to 128 lanes for dense (unmasked) output stores.
    fw3 = jnp.zeros((HIDDEN, OUT_PAD), f32).at[:, :OUT].set(p["fc3_w"].T)
    fb3 = jnp.zeros((1, OUT_PAD), f32).at[0, :OUT].set(p["fc3_b"])

    return dict(
        w1=w1.astype(bf16), b1=p["conv1_b"].reshape(1, C_CONV).astype(f32),
        w2=fuse_taps(p["conv2_w"]).astype(bf16),
        b2=p["conv2_b"].reshape(1, C_CONV).astype(f32),
        w3=fuse_taps(p["conv3_w"]).astype(bf16),
        b3=p["conv3_b"].reshape(1, C_CONV).astype(f32),
        fw1=fw1.astype(bf16), fb1=fb1,
        fw2=fw2.astype(bf16), fb2=fb2,
        fw3=fw3.astype(bf16), fb3=fb3,
    )


# ---------------------------------------------------------------------------
# Per-generation block-size / VMEM-limit defaults
# ---------------------------------------------------------------------------
def _device_defaults():
    try:
        kind = jax.devices()[0].device_kind.lower()
    except Exception:  # pragma: no cover
        kind = ""
    if "v6" in kind:                                   # v6e: 128 MiB physical VMEM
        return 512, 100 * 2**20
    if "v5 lite" in kind or "v5e" in kind:             # v5e: 16 MiB default scoped
        return 256, 64 * 2**20
    return 256, 48 * 2**20                             # v7x (64 MiB) / unknown


# ---------------------------------------------------------------------------
# Forward wrapper: input relayout (+ conv1 im2col) + single pallas_call + slice
# ---------------------------------------------------------------------------
def model_forward(x, prep, *, block_b=None):
    B = x.shape[0]
    x = x.reshape(B, C_IN, L).astype(jnp.float32)

    cap, vmem_limit = _device_defaults()
    if block_b is None:
        block_b = cap
        # Prefer >=2 grid steps for large batches so a 2-TC chip (v7x megacore)
        # gets both cores busy via dimension_semantics=("parallel",).
        if B >= 128:
            block_b = min(block_b, ((B + 1) // 2 + 7) // 8 * 8)

    # Batch block size: multiple of 8, at most block_b; pad batch to fit.
    tb = block_b if B >= block_b else ((B + 7) // 8) * 8
    nb = (B + tb - 1) // tb
    b_pad = nb * tb
    if b_pad != B:
        x = jnp.pad(x, ((0, b_pad - B), (0, 0), (0, 0)))

    # Offline im2col for conv_1: lanes = (tap k, channel c), rows = (block, l, b).
    # TODO(synk): this relayout is a separate tiny HBM pass (352 B/sample);
    #             could be fused into the producer if it ever matters.
    xp = jnp.pad(x, ((0, 0), (0, 0), (1, 1)))                       # (b_pad,4,L+2)
    taps = jnp.stack([xp[:, :, k:k + L] for k in range(3)], axis=1)  # (b_pad,3,4,L)
    x2d = (taps.reshape(nb, tb, 3, C_IN, L)
               .transpose(0, 4, 1, 2, 3)
               .reshape(nb * L * tb, 3 * C_IN)
               .astype(jnp.bfloat16))

    n_rows = L * tb

    def const2(i):
        return (0, 0)

    def const3(i):
        return (0, 0, 0)

    in_specs = [
        pl.BlockSpec((n_rows, 3 * C_IN), lambda i: (i, 0)),      # x (im2col, bf16)
        pl.BlockSpec((3 * C_IN, C_CONV), const2),                # conv1 W (im2col)
        pl.BlockSpec((1, C_CONV), const2),                       # conv1 b
        pl.BlockSpec((C_CONV, 3 * C_CONV), const2),              # conv2 W (taps fused)
        pl.BlockSpec((1, C_CONV), const2),                       # conv2 b
        pl.BlockSpec((C_CONV, 3 * C_CONV), const2),              # conv3 W (taps fused)
        pl.BlockSpec((1, C_CONV), const2),                       # conv3 b
        pl.BlockSpec((L, C_CONV, HIDDEN), const3),               # fc1 W (folded)
        pl.BlockSpec((1, HIDDEN), const2),                       # fc1 b (folded)
        pl.BlockSpec((HIDDEN, HIDDEN), const2),                  # fc2 W (folded)
        pl.BlockSpec((1, HIDDEN), const2),                       # fc2 b (folded)
        pl.BlockSpec((HIDDEN, OUT_PAD), const2),                 # fc3 W (padded)
        pl.BlockSpec((1, OUT_PAD), const2),                      # fc3 b (padded)
    ]
    out_spec = pl.BlockSpec((tb, OUT_PAD), lambda i: (i, 0))

    out = pl.pallas_call(
        _fused_kernel,
        out_shape=jax.ShapeDtypeStruct((b_pad, OUT_PAD), jnp.float32),
        grid=(nb,),
        in_specs=in_specs,
        out_specs=out_spec,
        compiler_params=pltpu.CompilerParams(
            dimension_semantics=("parallel",),
            vmem_limit_bytes=vmem_limit),
    )(x2d, prep["w1"], prep["b1"], prep["w2"], prep["b2"],
      prep["w3"], prep["b3"], prep["fw1"], prep["fb1"],
      prep["fw2"], prep["fb2"], prep["fw3"], prep["fb3"])

    return out[:B, :OUT]


# ---------------------------------------------------------------------------
# Parameter init (deterministic, matches PyTorch module shapes)
# ---------------------------------------------------------------------------
def init_params(key):
    keys = jax.random.split(key, 12)
    p = {}
    # Conv2d weights (out, in, 3, 1) — stored squeezed to (out, in, 3)
    p["conv1_w"] = 0.1 * jax.random.normal(keys[0], (C_CONV, C_IN, 3), jnp.float32)
    p["conv1_b"] = 0.1 * jax.random.normal(keys[1], (C_CONV,), jnp.float32)
    p["conv2_w"] = 0.05 * jax.random.normal(keys[2], (C_CONV, C_CONV, 3), jnp.float32)
    p["conv2_b"] = 0.1 * jax.random.normal(keys[3], (C_CONV,), jnp.float32)
    p["conv3_w"] = 0.05 * jax.random.normal(keys[4], (C_CONV, C_CONV, 3), jnp.float32)
    p["conv3_b"] = 0.1 * jax.random.normal(keys[5], (C_CONV,), jnp.float32)
    # Linear weights (out, in)
    p["fc1_w"] = 0.02 * jax.random.normal(keys[6], (HIDDEN, C_CONV * L), jnp.float32)
    p["fc1_b"] = 0.1 * jax.random.normal(keys[7], (HIDDEN,), jnp.float32)
    p["fc2_w"] = 0.05 * jax.random.normal(keys[8], (HIDDEN, HIDDEN), jnp.float32)
    p["fc2_b"] = 0.1 * jax.random.normal(keys[9], (HIDDEN,), jnp.float32)
    p["fc3_w"] = 0.05 * jax.random.normal(keys[10], (OUT, HIDDEN), jnp.float32)
    p["fc3_b"] = 0.1 * jax.random.normal(keys[11], (OUT,), jnp.float32)
    # BatchNorm1d params (fresh init: gamma=1, beta=0, mean=0, var=1)
    for i in (1, 2):
        p[f"bn{i}_g"] = jnp.ones((HIDDEN,), jnp.float32)
        p[f"bn{i}_b"] = jnp.zeros((HIDDEN,), jnp.float32)
        p[f"bn{i}_m"] = jnp.zeros((HIDDEN,), jnp.float32)
        p[f"bn{i}_v"] = jnp.ones((HIDDEN,), jnp.float32)
    return p


# ---------------------------------------------------------------------------
# Pure-JAX f32 reference (for correctness check)
# ---------------------------------------------------------------------------
def reference_forward(x, p):
    B = x.shape[0]
    h = x.reshape(B, C_IN, L)
    for i in (1, 2, 3):
        w, b = p[f"conv{i}_w"], p[f"conv{i}_b"]          # (Cout, Cin, 3), (Cout,)
        hp = jnp.pad(h, ((0, 0), (0, 0), (1, 1)))
        out = sum(jnp.einsum("oc,bcl->bol", w[:, :, k], hp[:, :, k:k + L])
                  for k in range(3)) + b[None, :, None]
        h = jnp.maximum(out, 0.0)
    feat = h.reshape(B, C_CONV * L)

    def bn(x, g, b, m, v):
        return (x - m) / jnp.sqrt(v + BN_EPS) * g + b

    h = feat @ p["fc1_w"].T + p["fc1_b"]
    h = jnp.maximum(bn(h, p["bn1_g"], p["bn1_b"], p["bn1_m"], p["bn1_v"]), 0.0)
    h = h @ p["fc2_w"].T + p["fc2_b"]
    h = jnp.maximum(bn(h, p["bn2_g"], p["bn2_b"], p["bn2_m"], p["bn2_v"]), 0.0)
    return h @ p["fc3_w"].T + p["fc3_b"]


if __name__ == "__main__":
    key = jax.random.PRNGKey(0)
    kx, kp = jax.random.split(key)

    B = 8
    x = jax.random.normal(kx, (B, C_IN, L, 1), jnp.float32)   # matches view(-1,4,22,1)
    params = init_params(kp)
    prep = prepare_params(params)          # one-time, offline (layout + BN fold + bf16)

    fwd = jax.jit(model_forward)
    out = jax.block_until_ready(fwd(x, prep))
    ref = jax.block_until_ready(reference_forward(x, params))

    assert out.shape == (B, OUT), f"bad output shape {out.shape}"
    err = float(jnp.max(jnp.abs(out - ref)))
    # bf16 MXU operands (f32 accumulation) -> loosened tolerance vs pure-f32 ref.
    assert jnp.allclose(out, ref, rtol=2e-2, atol=2e-2), f"mismatch: max abs err {err}"
    print("KERNEL_OK")
</pallas_src>

<mosaic_0001>
module attributes {stable_mosaic.version = 11 : i64} {
  func.func @_fused_kernel(%arg0: i32, %arg1: memref<176x12xbf16, #tpu.memory_space<vmem>>, %arg2: memref<12x64xbf16, #tpu.memory_space<vmem>>, %arg3: memref<1x64xf32, #tpu.memory_space<vmem>>, %arg4: memref<64x192xbf16, #tpu.memory_space<vmem>>, %arg5: memref<1x64xf32, #tpu.memory_space<vmem>>, %arg6: memref<64x192xbf16, #tpu.memory_space<vmem>>, %arg7: memref<1x64xf32, #tpu.memory_space<vmem>>, %arg8: memref<22x64x128xbf16, #tpu.memory_space<vmem>>, %arg9: memref<1x128xf32, #tpu.memory_space<vmem>>, %arg10: memref<128x128xbf16, #tpu.memory_space<vmem>>, %arg11: memref<1x128xf32, #tpu.memory_space<vmem>>, %arg12: memref<128x128xbf16, #tpu.memory_space<vmem>>, %arg13: memref<1x128xf32, #tpu.memory_space<vmem>>, %arg14: memref<8x128xf32, #tpu.memory_space<vmem>>) attributes {dimension_semantics = [#tpu.dimension_semantics<parallel>], iteration_bounds = array<i64: 1>, scalar_prefetch = 0 : i64, scratch_operands = 0 : i64, tpu.core_type = #tpu.core_type<tc>, window_params = [{transform_indices = @transform_0, window_bounds = array<i64: 176, 12>}, {pipeline_mode = #tpu.pipeline_mode<synchronous>, transform_indices = @transform_1, window_bounds = array<i64: 12, 64>}, {pipeline_mode = #tpu.pipeline_mode<synchronous>, transform_indices = @transform_2, window_bounds = array<i64: 1, 64>}, {pipeline_mode = #tpu.pipeline_mode<synchronous>, transform_indices = @transform_3, window_bounds = array<i64: 64, 192>}, {pipeline_mode = #tpu.pipeline_mode<synchronous>, transform_indices = @transform_4, window_bounds = array<i64: 1, 64>}, {pipeline_mode = #tpu.pipeline_mode<synchronous>, transform_indices = @transform_5, window_bounds = array<i64: 64, 192>}, {pipeline_mode = #tpu.pipeline_mode<synchronous>, transform_indices = @transform_6, window_bounds = array<i64: 1, 64>}, {pipeline_mode = #tpu.pipeline_mode<synchronous>, transform_indices = @transform_7, window_bounds = array<i64: 22, 64, 128>}, {pipeline_mode = #tpu.pipeline_mode<synchronous>, transform_indices = @transform_8, window_bounds = array<i64: 1, 128>}, {pipeline_mode = #tpu.pipeline_mode<synchronous>, transform_indices = @transform_9, window_bounds = array<i64: 128, 128>}, {pipeline_mode = #tpu.pipeline_mode<synchronous>, transform_indices = @transform_10, window_bounds = array<i64: 1, 128>}, {pipeline_mode = #tpu.pipeline_mode<synchronous>, transform_indices = @transform_11, window_bounds = array<i64: 128, 128>}, {pipeline_mode = #tpu.pipeline_mode<synchronous>, transform_indices = @transform_12, window_bounds = array<i64: 1, 128>}, {transform_indices = @transform_13, window_bounds = array<i64: 8, 128>}]} {
    %c0 = arith.constant 0 : index
    %c0_0 = arith.constant 0 : index
    %0 = vector.load %arg1[%c0, %c0_0] : memref<176x12xbf16, #tpu.memory_space<vmem>>, vector<176x12xbf16>
    %c0_1 = arith.constant 0 : index
    %c0_2 = arith.constant 0 : index
    %1 = vector.load %arg2[%c0_1, %c0_2] : memref<12x64xbf16, #tpu.memory_space<vmem>>, vector<12x64xbf16>
    %cst = arith.constant dense<0.000000e+00> : vector<176x64xf32>
    %2 = tpu.matmul %0, %1, %cst {dimension_numbers = #tpu.dot_dimension_numbers<[1], [0], [0], [1], [0, 0, 1, 1], [], []>} : vector<176x12xbf16>, vector<12x64xbf16>, vector<176x64xf32> -> vector<176x64xf32>
    %c0_3 = arith.constant 0 : index
    %c0_4 = arith.constant 0 : index
    %3 = vector.load %arg3[%c0_3, %c0_4] : memref<1x64xf32, #tpu.memory_space<vmem>>, vector<1x64xf32>
    %4 = vector.broadcast %3 : vector<1x64xf32> to vector<176x64xf32>
    %5 = arith.addf %2, %4 : vector<176x64xf32>
    %cst_5 = arith.constant 0.000000e+00 : f32
    %6 = vector.broadcast %cst_5 : f32 to vector<176x64xf32>
    %7 = arith.maximumf %5, %6 : vector<176x64xf32>
    %cst_6 = arith.constant 0.000000e+00 : f32
    %8 = vector.broadcast %cst_6 : f32 to vector<8x64xf32>
    %9 = arith.truncf %7 : vector<176x64xf32> to vector<176x64xbf16>
    %c0_7 = arith.constant 0 : index
    %c0_8 = arith.constant 0 : index
    %10 = vector.load %arg4[%c0_7, %c0_8] : memref<64x192xbf16, #tpu.memory_space<vmem>>, vector<64x192xbf16>
    %cst_9 = arith.constant dense<0.000000e+00> : vector<176x192xf32>
    %11 = tpu.matmul %9, %10, %cst_9 {dimension_numbers = #tpu.dot_dimension_numbers<[1], [0], [0], [1], [0, 0, 1, 1], [], []>} : vector<176x64xbf16>, vector<64x192xbf16>, vector<176x192xf32> -> vector<176x192xf32>
    %12 = vector.extract_strided_slice %11 {offsets = [0, 0], sizes = [176, 64], strides = [1, 1]} : vector<176x192xf32> to vector<176x64xf32>
    %13 = vector.extract_strided_slice %11 {offsets = [0, 64], sizes = [176, 64], strides = [1, 1]} : vector<176x192xf32> to vector<176x64xf32>
    %14 = vector.extract_strided_slice %11 {offsets = [0, 128], sizes = [176, 64], strides = [1, 1]} : vector<176x192xf32> to vector<176x64xf32>
    %15 = vector.extract_strided_slice %12 {offsets = [0, 0], sizes = [168, 64], strides = [1, 1]} : vector<176x64xf32> to vector<168x64xf32>
    %16 = tpu.concatenate %8, %15 in 0 : vector<8x64xf32>, vector<168x64xf32> -> vector<176x64xf32>
    %17 = vector.extract_strided_slice %14 {offsets = [8, 0], sizes = [168, 64], strides = [1, 1]} : vector<176x64xf32> to vector<168x64xf32>
    %18 = tpu.concatenate %17, %8 in 0 : vector<168x64xf32>, vector<8x64xf32> -> vector<176x64xf32>
    %19 = arith.addf %16, %13 : vector<176x64xf32>
    %20 = arith.addf %19, %18 : vector<176x64xf32>
    %c0_10 = arith.constant 0 : index
    %c0_11 = arith.constant 0 : index
    %21 = vector.load %arg5[%c0_10, %c0_11] : memref<1x64xf32, #tpu.memory_space<vmem>>, vector<1x64xf32>
    %22 = vector.broadcast %21 : vector<1x64xf32> to vector<176x64xf32>
    %23 = arith.addf %20, %22 : vector<176x64xf32>
    %cst_12 = arith.constant 0.000000e+00 : f32
    %24 = vector.broadcast %cst_12 : f32 to vector<176x64xf32>
    %25 = arith.maximumf %23, %24 : vector<176x64xf32>
    %26 = arith.truncf %25 : vector<176x64xf32> to vector<176x64xbf16>
    %c0_13 = arith.constant 0 : index
    %c0_14 = arith.constant 0 : index
    %27 = vector.load %arg6[%c0_13, %c0_14] : memref<64x192xbf16, #tpu.memory_space<vmem>>, vector<64x192xbf16>
    %cst_15 = arith.constant dense<0.000000e+00> : vector<176x192xf32>
    %28 = tpu.matmul %26, %27, %cst_15 {dimension_numbers = #tpu.dot_dimension_numbers<[1], [0], [0], [1], [0, 0, 1, 1], [], []>} : vector<176x64xbf16>, vector<64x192xbf16>, vector<176x192xf32> -> vector<176x192xf32>
    %29 = vector.extract_strided_slice %28 {offsets = [0, 0], sizes = [176, 64], strides = [1, 1]} : vector<176x192xf32> to vector<176x64xf32>
    %30 = vector.extract_strided_slice %28 {offsets = [0, 64], sizes = [176, 64], strides = [1, 1]} : vector<176x192xf32> to vector<176x64xf32>
    %31 = vector.extract_strided_slice %28 {offsets = [0, 128], sizes = [176, 64], strides = [1, 1]} : vector<176x192xf32> to vector<176x64xf32>
    %32 = vector.extract_strided_slice %29 {offsets = [0, 0], sizes = [168, 64], strides = [1, 1]} : vector<176x64xf32> to vector<168x64xf32>
    %33 = tpu.concatenate %8, %32 in 0 : vector<8x64xf32>, vector<168x64xf32> -> vector<176x64xf32>
    %34 = vector.extract_strided_slice %31 {offsets = [8, 0], sizes = [168, 64], strides = [1, 1]} : vector<176x64xf32> to vector<168x64xf32>
    %35 = tpu.concatenate %34, %8 in 0 : vector<168x64xf32>, vector<8x64xf32> -> vector<176x64xf32>
    %36 = arith.addf %33, %30 : vector<176x64xf32>
    %37 = arith.addf %36, %35 : vector<176x64xf32>
    %c0_16 = arith.constant 0 : index
    %c0_17 = arith.constant 0 : index
    %38 = vector.load %arg7[%c0_16, %c0_17] : memref<1x64xf32, #tpu.memory_space<vmem>>, vector<1x64xf32>
    %39 = vector.broadcast %38 : vector<1x64xf32> to vector<176x64xf32>
    %40 = arith.addf %37, %39 : vector<176x64xf32>
    %cst_18 = arith.constant 0.000000e+00 : f32
    %41 = vector.broadcast %cst_18 : f32 to vector<176x64xf32>
    %42 = arith.maximumf %40, %41 : vector<176x64xf32>
    %43 = vector.shape_cast %42 : vector<176x64xf32> to vector<22x8x64xf32>
    %44 = arith.truncf %43 : vector<22x8x64xf32> to vector<22x8x64xbf16>
    %c0_19 = arith.constant 0 : index
    %c0_20 = arith.constant 0 : index
    %c0_21 = arith.constant 0 : index
    %45 = vector.load %arg8[%c0_19, %c0_20, %c0_21] : memref<22x64x128xbf16, #tpu.memory_space<vmem>>, vector<22x64x128xbf16>
    "tpu.trace_start"() <{level = 10 : i32, message = "lbc,lco->lbo"}> : () -> ()
    %cst_22 = arith.constant dense<0.000000e+00> : vector<22x8x128xf32>
    %46 = tpu.matmul %44, %45, %cst_22 {dimension_numbers = #tpu.dot_dimension_numbers<[2], [1], [1], [2], [0, 0, 0, 1, 1, 2], [0], [0]>} : vector<22x8x64xbf16>, vector<22x64x128xbf16>, vector<22x8x128xf32> -> vector<22x8x128xf32>
    "tpu.trace_stop"() : () -> ()
    %cst_23 = arith.constant dense<0.000000e+00> : vector<8x128xf32>
    %47 = vector.multi_reduction <add>, %46, %cst_23 [0] : vector<22x8x128xf32> to vector<8x128xf32>
    %c0_24 = arith.constant 0 : index
    %c0_25 = arith.constant 0 : index
    %48 = vector.load %arg9[%c0_24, %c0_25] : memref<1x128xf32, #tpu.memory_space<vmem>>, vector<1x128xf32>
    %49 = vector.broadcast %48 : vector<1x128xf32> to vector<8x128xf32>
    %50 = arith.addf %47, %49 : vector<8x128xf32>
    %cst_26 = arith.constant 0.000000e+00 : f32
    %51 = vector.broadcast %cst_26 : f32 to vector<8x128xf32>
    %52 = arith.maximumf %50, %51 : vector<8x128xf32>
    %53 = arith.truncf %52 : vector<8x128xf32> to vector<8x128xbf16>
    %c0_27 = arith.constant 0 : index
    %c0_28 = arith.constant 0 : index
    %54 = vector.load %arg10[%c0_27, %c0_28] : memref<128x128xbf16, #tpu.memory_space<vmem>>, vector<128x128xbf16>
    %cst_29 = arith.constant dense<0.000000e+00> : vector<8x128xf32>
    %55 = tpu.matmul %53, %54, %cst_29 {dimension_numbers = #tpu.dot_dimension_numbers<[1], [0], [0], [1], [0, 0, 1, 1], [], []>} : vector<8x128xbf16>, vector<128x128xbf16>, vector<8x128xf32> -> vector<8x128xf32>
    %c0_30 = arith.constant 0 : index
    %c0_31 = arith.constant 0 : index
    %56 = vector.load %arg11[%c0_30, %c0_31] : memref<1x128xf32, #tpu.memory_space<vmem>>, vector<1x128xf32>
    %57 = vector.broadcast %56 : vector<1x128xf32> to vector<8x128xf32>
    %58 = arith.addf %55, %57 : vector<8x128xf32>
    %cst_32 = arith.constant 0.000000e+00 : f32
    %59 = vector.broadcast %cst_32 : f32 to vector<8x128xf32>
    %60 = arith.maximumf %58, %59 : vector<8x128xf32>
    %61 = arith.truncf %60 : vector<8x128xf32> to vector<8x128xbf16>
    %c0_33 = arith.constant 0 : index
    %c0_34 = arith.constant 0 : index
    %62 = vector.load %arg12[%c0_33, %c0_34] : memref<128x128xbf16, #tpu.memory_space<vmem>>, vector<128x128xbf16>
    %cst_35 = arith.constant dense<0.000000e+00> : vector<8x128xf32>
    %63 = tpu.matmul %61, %62, %cst_35 {dimension_numbers = #tpu.dot_dimension_numbers<[1], [0], [0], [1], [0, 0, 1, 1], [], []>} : vector<8x128xbf16>, vector<128x128xbf16>, vector<8x128xf32> -> vector<8x128xf32>
    %c0_36 = arith.constant 0 : index
    %c0_37 = arith.constant 0 : index
    %64 = vector.load %arg13[%c0_36, %c0_37] : memref<1x128xf32, #tpu.memory_space<vmem>>, vector<1x128xf32>
    %65 = vector.broadcast %64 : vector<1x128xf32> to vector<8x128xf32>
    %66 = arith.addf %63, %65 : vector<8x128xf32>
    %c0_38 = arith.constant 0 : index
    %c0_39 = arith.constant 0 : index
    %67 = vector.load %arg14[%c0_38, %c0_39] : memref<8x128xf32, #tpu.memory_space<vmem>>, vector<8x128xf32>
    tpu.vector_store %arg14[%c0_38, %c0_39], %66 {strides = array<i32>} : memref<8x128xf32, #tpu.memory_space<vmem>>, vector<8x128xf32>,
    return
  }
  func.func @transform_0(%arg0: i32) -> (i32, i32) {
    %c0_i32 = arith.constant 0 : i32
    %c0_i32_0 = arith.constant 0 : i32
    return %arg0, %c0_i32 : i32, i32
  }
  func.func @transform_1(%arg0: i32) -> (i32, i32) {
    %c0_i32 = arith.constant 0 : i32
    %c0_i32_0 = arith.constant 0 : i32
    %c0_i32_1 = arith.constant 0 : i32
    return %c0_i32, %c0_i32_0 : i32, i32
  }
  func.func @transform_2(%arg0: i32) -> (i32, i32) {
    %c0_i32 = arith.constant 0 : i32
    %c0_i32_0 = arith.constant 0 : i32
    %c0_i32_1 = arith.constant 0 : i32
    return %c0_i32, %c0_i32_0 : i32, i32
  }
  func.func @transform_3(%arg0: i32) -> (i32, i32) {
    %c0_i32 = arith.constant 0 : i32
    %c0_i32_0 = arith.constant 0 : i32
    %c0_i32_1 = arith.constant 0 : i32
    return %c0_i32, %c0_i32_0 : i32, i32
  }
  func.func @transform_4(%arg0: i32) -> (i32, i32) {
    %c0_i32 = arith.constant 0 : i32
    %c0_i32_0 = arith.constant 0 : i32
    %c0_i32_1 = arith.constant 0 : i32
    return %c0_i32, %c0_i32_0 : i32, i32
  }
  func.func @transform_5(%arg0: i32) -> (i32, i32) {
    %c0_i32 = arith.constant 0 : i32
    %c0_i32_0 = arith.constant 0 : i32
    %c0_i32_1 = arith.constant 0 : i32
    return %c0_i32, %c0_i32_0 : i32, i32
  }
  func.func @transform_6(%arg0: i32) -> (i32, i32) {
    %c0_i32 = arith.constant 0 : i32
    %c0_i32_0 = arith.constant 0 : i32
    %c0_i32_1 = arith.constant 0 : i32
    return %c0_i32, %c0_i32_0 : i32, i32
  }
  func.func @transform_7(%arg0: i32) -> (i32, i32, i32) {
    %c0_i32 = arith.constant 0 : i32
    %c0_i32_0 = arith.constant 0 : i32
    %c0_i32_1 = arith.constant 0 : i32
    %c0_i32_2 = arith.constant 0 : i32
    return %c0_i32, %c0_i32_0, %c0_i32_1 : i32, i32, i32
  }
  func.func @transform_8(%arg0: i32) -> (i32, i32) {
    %c0_i32 = arith.constant 0 : i32
    %c0_i32_0 = arith.constant 0 : i32
    %c0_i32_1 = arith.constant 0 : i32
    return %c0_i32, %c0_i32_0 : i32, i32
  }
  func.func @transform_9(%arg0: i32) -> (i32, i32) {
    %c0_i32 = arith.constant 0 : i32
    %c0_i32_0 = arith.constant 0 : i32
    %c0_i32_1 = arith.constant 0 : i32
    return %c0_i32, %c0_i32_0 : i32, i32
  }
  func.func @transform_10(%arg0: i32) -> (i32, i32) {
    %c0_i32 = arith.constant 0 : i32
    %c0_i32_0 = arith.constant 0 : i32
    %c0_i32_1 = arith.constant 0 : i32
    return %c0_i32, %c0_i32_0 : i32, i32
  }
  func.func @transform_11(%arg0: i32) -> (i32, i32) {
    %c0_i32 = arith.constant 0 : i32
    %c0_i32_0 = arith.constant 0 : i32
    %c0_i32_1 = arith.constant 0 : i32
    return %c0_i32, %c0_i32_0 : i32, i32
  }
  func.func @transform_12(%arg0: i32) -> (i32, i32) {
    %c0_i32 = arith.constant 0 : i32
    %c0_i32_0 = arith.constant 0 : i32
    %c0_i32_1 = arith.constant 0 : i32
    return %c0_i32, %c0_i32_0 : i32, i32
  }
  func.func @transform_13(%arg0: i32) -> (i32, i32) {
    %c0_i32 = arith.constant 0 : i32
    %c0_i32_0 = arith.constant 0 : i32
    return %arg0, %c0_i32 : i32, i32
  }
}

</mosaic_0001>

<llo_original>
// kernel: model_forward.1
$region0: #{model_forward.1}
  #allocation0 [shape = 'u32[]', space=smem, size = 0x4, offset = 0x4, fixed_abs, tag = 'smem constant byte address 0x4 - core index']
  #allocation1 [shape = 'u32[144,128]{1,0:T(1,128)}', space=vmem, size = 0x12000, scoped, tag = 'internal scratch']
  %s0 = inlined_call_operand.vmem [shape: bf16[176,12], index: 0, kind: input, shape index: {}]
  %s1 = inlined_call_operand.vmem [shape: bf16[12,64], index: 1, kind: input, shape index: {}]
  %s2 = inlined_call_operand.vmem [shape: f32[1,64], index: 2, kind: input, shape index: {}]
  %s3 = inlined_call_operand.vmem [shape: bf16[64,192], index: 3, kind: input, shape index: {}]
  %s4 = inlined_call_operand.vmem [shape: f32[1,64], index: 4, kind: input, shape index: {}]
  %s5 = inlined_call_operand.hbm [shape: bf16[64,192], index: 5, kind: input, shape index: {}]
  %s6 = inlined_call_operand.vmem [shape: f32[1,64], index: 6, kind: input, shape index: {}]
  %s7 = inlined_call_operand.vmem [shape: bf16[22,64,128], index: 7, kind: input, shape index: {}]
  %s8 = inlined_call_operand.vmem [shape: f32[1,128], index: 8, kind: input, shape index: {}]
  %s9 = inlined_call_operand.hbm [shape: bf16[128,128], index: 9, kind: input, shape index: {}]
  %s10 = inlined_call_operand.vmem [shape: f32[1,128], index: 10, kind: input, shape index: {}]
  %s11 = inlined_call_operand.hbm [shape: bf16[128,128], index: 11, kind: input, shape index: {}]
  %s12 = inlined_call_operand.vmem [shape: f32[1,128], index: 12, kind: input, shape index: {}]
  %s13 = inlined_call_operand.hbm [shape: f32[8,128], index: 13, kind: output, shape index: {}]
  %s14 = sld [smem:[#allocation0]]
  $region74: #{model_forward.1} parent=0
    _
  %s16 = ssub.s32 1, %s14
  %s17 = scalar_select 0, %s16, %s14
  $region1: #{model_forward.1} parent=0
    #allocation2 [shape = 'u8[32768]{0}', space=vmem, size = 0x8000, scoped, tag = 'input window, operand 5, single buffered']
    #allocation3 [shape = 's32[1]{0}', space=sflag, size = 0x4, scoped, tag = 'scoped memory for model_forward.1']
    #allocation4 [shape = 's32[1]{0}', space=sflag, size = 0x4, scoped, tag = 'scoped memory for model_forward.1']
    #allocation5 [shape = 'u8[32768]{0}', space=vmem, size = 0x8000, scoped, tag = 'input window, operand 9, single buffered']
    #allocation6 [shape = 's32[1]{0}', space=sflag, size = 0x4, scoped, tag = 'scoped memory for model_forward.1']
    #allocation7 [shape = 'u8[32768]{0}', space=vmem, size = 0x8000, scoped, tag = 'input window, operand 11, single buffered']
    #allocation8 [shape = 'u8[4096]{0}', space=vmem, size = 0x1000, scoped, tag = 'output window, operand 0, single buffered']
    %18 = vsyncpa [#allocation3], 0
    %19 = vsyncpa [#allocation6], 0
    %20 = vsyncpa [#allocation4], 0
    // Predicated region
    $region2: #{model_forward.1} parent=1 // pred_check
      _
    $region3: #{model_forward.1} parent=1 // pred_check_branch
      %22 = sbr.rel (0) target = $region5
    $region4: #{model_forward.1} parent=1 // pred_region
      _
    $region5: #{model_forward.1} parent=1 // pred_fallthru
      _
    // Predicated region
    $region6: #{model_forward.1} parent=1 // pred_check
      _
    $region7: #{model_forward.1} parent=1 // pred_check_branch
      %24 = sbr.rel (0) target = $region9
    $region8: #{model_forward.1} parent=1 // pred_region
      _
    $region9: #{model_forward.1} parent=1 // pred_fallthru
      _
    // Predicated region
    $region10: #{model_forward.1} parent=1 // pred_check
      _
    $region11: #{model_forward.1} parent=1 // pred_check_branch
      %26 = sbr.rel (0) target = $region13
    $region12: #{model_forward.1} parent=1 // pred_region
      _
    $region13: #{model_forward.1} parent=1 // pred_fallthru
      _
    // Predicated region
    $region14: #{model_forward.1} parent=1 // pred_check
      _
    $region15: #{model_forward.1} parent=1 // pred_check_branch
      %28 = sbr.rel (0) target = $region17
    $region16: #{model_forward.1} parent=1 // pred_region
      _
    $region17: #{model_forward.1} parent=1 // pred_fallthru
      _
    // Predicated region
    $region18: #{model_forward.1} parent=1 // pred_check
      _
    $region19: #{model_forward.1} parent=1 // pred_check_branch
      %30 = sbr.rel (0) target = $region21
    $region20: #{model_forward.1} parent=1 // pred_region
      _
    $region21: #{model_forward.1} parent=1 // pred_fallthru
      _
    // Predicated region
    $region22: #{model_forward.1} parent=1 // pred_check
      _
    $region23: #{model_forward.1} parent=1 // pred_check_branch
      %32 = sbr.rel (0) target = $region25
    $region24: #{model_forward.1} parent=1 // pred_region
      %s34 = ssub.s32 1024, 1024
      %35 = vsyncadd [#allocation3], %s34
      %s36 = sshll.u32 [#allocation2], 4
      %s37 = int_to_ptr.vmem [resolvable:$true] %s36
      %42 = dma.hbm_to_vmem [thread:$0]  %s5, 1024, %s37, [#allocation3], 128, 128, 8
    $region25: #{model_forward.1} parent=1 // pred_fallthru
      _
    // Predicated region
    $region26: #{model_forward.1} parent=1 // pred_check
      _
    $region27: #{model_forward.1} parent=1 // pred_check_branch
      %44 = sbr.rel (0) target = $region29
    $region28: #{model_forward.1} parent=1 // pred_region
      _
    $region29: #{model_forward.1} parent=1 // pred_fallthru
      _
    // Predicated region
    $region30: #{model_forward.1} parent=1 // pred_check
      _
    $region31: #{model_forward.1} parent=1 // pred_check_branch
      %46 = sbr.rel (0) target = $region33
    $region32: #{model_forward.1} parent=1 // pred_region
      _
    $region33: #{model_forward.1} parent=1 // pred_fallthru
      _
    // Predicated region
    $region34: #{model_forward.1} parent=1 // pred_check
      _
    $region35: #{model_forward.1} parent=1 // pred_check_branch
      %48 = sbr.rel (0) target = $region37
    $region36: #{model_forward.1} parent=1 // pred_region
      _
    $region37: #{model_forward.1} parent=1 // pred_fallthru
      _
    // Predicated region
    $region38: #{model_forward.1} parent=1 // pred_check
      _
    $region39: #{model_forward.1} parent=1 // pred_check_branch
      %50 = sbr.rel (0) target = $region41
    $region40: #{model_forward.1} parent=1 // pred_region
      %s52 = ssub.s32 1024, 1024
      %53 = vsyncadd [#allocation6], %s52
      %s54 = sshll.u32 [#allocation5], 4
      %s55 = int_to_ptr.vmem [resolvable:$true] %s54
      %60 = dma.hbm_to_vmem [thread:$0]  %s9, 1024, %s55, [#allocation6], 64, 64, 4
    $region41: #{model_forward.1} parent=1 // pred_fallthru
      _
    // Predicated region
    $region42: #{model_forward.1} parent=1 // pred_check
      _
    $region43: #{model_forward.1} parent=1 // pred_check_branch
      %62 = sbr.rel (0) target = $region45
    $region44: #{model_forward.1} parent=1 // pred_region
      _
    $region45: #{model_forward.1} parent=1 // pred_fallthru
      _
    // Predicated region
    $region46: #{model_forward.1} parent=1 // pred_check
      _
    $region47: #{model_forward.1} parent=1 // pred_check_branch
      %64 = sbr.rel (0) target = $region49
    $region48: #{model_forward.1} parent=1 // pred_region
      %s66 = ssub.s32 1024, 1024
      %67 = vsyncadd [#allocation6], %s66
      %s68 = sshll.u32 [#allocation7], 4
      %s69 = int_to_ptr.vmem [resolvable:$true] %s68
      %74 = dma.hbm_to_vmem [thread:$0]  %s11, 1024, %s69, [#allocation6], 64, 64, 4
    $region49: #{model_forward.1} parent=1 // pred_fallthru
      _
    // Predicated region
    $region50: #{model_forward.1} parent=1 // pred_check
      _
    $region51: #{model_forward.1} parent=1 // pred_check_branch
      %76 = sbr.rel (0) target = $region53
    $region52: #{model_forward.1} parent=1 // pred_region
      _
    $region53: #{model_forward.1} parent=1 // pred_fallthru
      _
    // Predicated region
    $region54: #{model_forward.1} parent=1 // pred_check
      _
    $region55: #{model_forward.1} parent=1 // pred_check_branch
      %78 = sbr.rel (0) target = $region57
    $region56: #{model_forward.1} parent=1 // pred_region
      %79 = dma.done [#allocation3], 1024
    $region57: #{model_forward.1} parent=1 // pred_fallthru
      _
    // Predicated region
    $region58: #{model_forward.1} parent=1 // pred_check
      _
    $region59: #{model_forward.1} parent=1 // pred_check_branch
      %81 = sbr.rel (0) target = $region61
    $region60: #{model_forward.1} parent=1 // pred_region
      %82 = dma.done [#allocation6], 1024
    $region61: #{model_forward.1} parent=1 // pred_fallthru
      _
    // Predicated region
    $region62: #{model_forward.1} parent=1 // pred_check
      _
    $region63: #{model_forward.1} parent=1 // pred_check_branch
      %84 = sbr.rel (0) target = $region65
    $region64: #{model_forward.1} parent=1 // pred_region
      %85 = dma.done [#allocation6], 1024
    $region65: #{model_forward.1} parent=1 // pred_fallthru
      _
    %v87 = vld [vmem:[%s0] sm:$0xf]
    %v88 = vld [vmem:[%s0 + $0x4] sm:$0xf]
    %v89 = vld [vmem:[%s0 + $0x8] sm:$0xf]
    %v90 = vld [vmem:[%s0 + $0xc] sm:$0xf]
    %v91 = vld [vmem:[%s0 + $0x10] sm:$0xf]
    %v92 = vld [vmem:[%s0 + $0x14] sm:$0xf]
    %v93 = vld [vmem:[%s0 + $0x18] sm:$0xf]
    %v94 = vld [vmem:[%s0 + $0x1c] sm:$0xf]
    %v95 = vld [vmem:[%s0 + $0x20] sm:$0xf]
    %v96 = vld [vmem:[%s0 + $0x24] sm:$0xf]
    %v97 = vld [vmem:[%s0 + $0x28] sm:$0xf]
    %v98 = vld [vmem:[%s0 + $0x2c] sm:$0xf]
    %v99 = vld [vmem:[%s0 + $0x30] sm:$0xf]
    %v100 = vld [vmem:[%s0 + $0x34] sm:$0xf]
    %v101 = vld [vmem:[%s0 + $0x38] sm:$0xf]
    %v102 = vld [vmem:[%s0 + $0x3c] sm:$0xf]
    %v103 = vld [vmem:[%s0 + $0x40] sm:$0xf]
    %v104 = vld [vmem:[%s0 + $0x44] sm:$0xf]
    %v105 = vld [vmem:[%s0 + $0x48] sm:$0xf]
    %v106 = vld [vmem:[%s0 + $0x4c] sm:$0xf]
    %v107 = vld [vmem:[%s0 + $0x50] sm:$0xf]
    %v108 = vld [vmem:[%s0 + $0x54] sm:$0xf]
    %v109 = vld [vmem:[%s1] sm:$0xf]
    %v110 = vld [vmem:[%s1 + $0x4] sm:$0x3]
    %v111 = vld [vmem:[%s2] sm:$0x1]
    %v113 = vlaneseq
    %v114 = vshrl.u32 %v113, 7
    %v115 = vsub.s32 0, %v114
    %v116 = vrot.slane %v111, %v115
    %v140 = vunpack.c.l.b16 %v87
    %v141 = vunpack.c.l.b16 %v88
    %v142 = vunpack.c.l.b16 %v89
    %v143 = vunpack.c.l.b16 %v90
    %v144 = vunpack.c.l.b16 %v91
    %v145 = vunpack.c.l.b16 %v92
    %v146 = vunpack.c.l.b16 %v93
    %v147 = vunpack.c.l.b16 %v94
    %v148 = vunpack.c.l.b16 %v95
    %v149 = vunpack.c.l.b16 %v96
    %v150 = vunpack.c.l.b16 %v97
    %v151 = vunpack.c.l.b16 %v98
    %v152 = vunpack.c.l.b16 %v99
    %v153 = vunpack.c.l.b16 %v100
    %v154 = vunpack.c.l.b16 %v101
    %v155 = vunpack.c.l.b16 %v102
    %v156 = vunpack.c.l.b16 %v103
    %v157 = vunpack.c.l.b16 %v104
    %v158 = vunpack.c.l.b16 %v105
    %v159 = vunpack.c.l.b16 %v106
    %v160 = vunpack.c.l.b16 %v107
    %v161 = vunpack.c.l.b16 %v108
    %v162 = vpack.c.b16 %v141, %v140
    %v163 = vpack.c.b16 %v143, %v142
    %v164 = vpack.c.b16 %v145, %v144
    %v165 = vpack.c.b16 %v147, %v146
    %v166 = vpack.c.b16 %v149, %v148
    %v167 = vpack.c.b16 %v151, %v150
    %v168 = vpack.c.b16 %v153, %v152
    %v169 = vpack.c.b16 %v155, %v154
    %v170 = vpack.c.b16 %v157, %v156
    %v171 = vpack.c.b16 %v159, %v158
    %v172 = vpack.c.b16 %v161, %v160
    %v175 = vunpack.c.l.b16 %v109
    %v176 = vunpack.c.l.b16 %v110
    %v177 = vpack.c.b16 %v176, %v175
    %vm178 = vcmask 97280
    %v180 = vsel %vm178, %v162, 0
    %v183 = vsel %vm178, %v163, 0
    %v186 = vsel %vm178, %v164, 0
    %v189 = vsel %vm178, %v165, 0
    %v192 = vsel %vm178, %v166, 0
    %v195 = vsel %vm178, %v167, 0
    %v198 = vsel %vm178, %v168, 0
    %v201 = vsel %vm178, %v169, 0
    %v204 = vsel %vm178, %v170, 0
    %v207 = vsel %vm178, %v171, 0
    %v210 = vsel %vm178, %v172, 0
    %vm212 = vcmask 1045504
    %v214 = vsel %vm212, %v177, 0
    %216 = vmatprep.subr.bf16.mxu0 0
    %217 = vmatpush1.bf16.msra.mxu0 %v214
    %218 = vmatprep.subr.bf16.mxu0 0
    %219 = vmatpush1.bf16.msra.mxu0 0
    %220 = vmatprep.subr.bf16.mxu0 0
    %221 = vmatpush1.bf16.msra.mxu0 0
    %222 = vmatprep.subr.bf16.mxu0 0
    %223 = vmatpush1.bf16.msra.mxu0 0
    %224 = vmatprep.subr.bf16.mxu0 0
    %225 = vmatpush1.bf16.msra.mxu0 0
    %226 = vmatprep.subr.bf16.mxu0 0
    %227 = vmatpush1.bf16.msra.mxu0 0
    %228 = vmatprep.subr.bf16.mxu0 0
    %229 = vmatpush1.bf16.msra.mxu0 0
    %230 = vmatprep.subr.bf16.mxu0 0
    %231 = vmatpush1.bf16.msra.mxu0 0
    %232 = vmatprep.subr.bf16.mxu0 0
    %233 = vmatpush1.bf16.msra.mxu0 0
    %234 = vmatprep.subr.bf16.mxu0 0
    %235 = vmatpush1.bf16.msra.mxu0 0
    %236 = vmatprep.subr.bf16.mxu0 0
    %237 = vmatpush1.bf16.msra.mxu0 0
    %238 = vmatprep.subr.bf16.mxu0 0
    %239 = vmatpush1.bf16.msra.mxu0 0
    %240 = vmatprep.subr.bf16.mxu0 0
    %241 = vmatpush1.bf16.msra.mxu0 0
    %242 = vmatprep.subr.bf16.mxu0 0
    %243 = vmatpush1.bf16.msra.mxu0 0
    %244 = vmatprep.subr.bf16.mxu0 0
    %245 = vmatpush1.bf16.msra.mxu0 0
    %246 = vmatprep.subr.bf16.mxu0 0
    %247 = vmatpush1.bf16.msra.mxu0 0
    %248 = vmatprep.mubr.bf16.mxu0 0
    %249 = vmatmul.mubr.bf16.gmra.mrb[0].mxu0 %v180
    %v250 = vpop.f32.mrb[0].mxu0
    %v251 = vadd.f32 %v116, %v250
    %v252 = vpop.f32.mrb[0].mxu0
    %v253 = vpop.f32.mrb[0].mxu0
    %v254 = vadd.f32 %v116, %v253
    %v255 = vpop.f32.mrb[0].mxu0
    %256 = vmatprep.mubr.bf16.mxu0 0
    %257 = vmatmul.mubr.bf16.gmra.mrb[0].mxu0 %v183
    %v258 = vpop.f32.mrb[0].mxu0
    %v259 = vadd.f32 %v116, %v258
    %v260 = vpop.f32.mrb[0].mxu0
    %v261 = vpop.f32.mrb[0].mxu0
    %v262 = vadd.f32 %v116, %v261
    %v263 = vpop.f32.mrb[0].mxu0
    %264 = vmatprep.mubr.bf16.mxu0 0
    %265 = vmatmul.mubr.bf16.gmra.mrb[0].mxu0 %v186
    %v266 = vpop.f32.mrb[0].mxu0
    %v267 = vadd.f32 %v116, %v266
    %v268 = vpop.f32.mrb[0].mxu0
    %v269 = vpop.f32.mrb[0].mxu0
    %v270 = vadd.f32 %v116, %v269
    %v271 = vpop.f32.mrb[0].mxu0
    %272 = vmatprep.mubr.bf16.mxu0 0
    %273 = vmatmul.mubr.bf16.gmra.mrb[0].mxu0 %v189
    %v274 = vpop.f32.mrb[0].mxu0
    %v275 = vadd.f32 %v116, %v274
    %v276 = vpop.f32.mrb[0].mxu0
    %v277 = vpop.f32.mrb[0].mxu0
    %v278 = vadd.f32 %v116, %v277
    %v279 = vpop.f32.mrb[0].mxu0
    %280 = vmatprep.mubr.bf16.mxu0 0
    %281 = vmatmul.mubr.bf16.gmra.mrb[0].mxu0 %v192
    %v282 = vpop.f32.mrb[0].mxu0
    %v283 = vadd.f32 %v116, %v282
    %v284 = vpop.f32.mrb[0].mxu0
    %v285 = vpop.f32.mrb[0].mxu0
    %v286 = vadd.f32 %v116, %v285
    %v287 = vpop.f32.mrb[0].mxu0
    %288 = vmatprep.mubr.bf16.mxu0 0
    %289 = vmatmul.mubr.bf16.gmra.mrb[0].mxu0 %v195
    %v290 = vpop.f32.mrb[0].mxu0
    %v291 = vadd.f32 %v116, %v290
    %v292 = vpop.f32.mrb[0].mxu0
    %v293 = vpop.f32.mrb[0].mxu0
    %v294 = vadd.f32 %v116, %v293
    %v295 = vpop.f32.mrb[0].mxu0
    %296 = vmatprep.mubr.bf16.mxu0 0
    %297 = vmatmul.mubr.bf16.gmra.mrb[0].mxu0 %v198
    %v298 = vpop.f32.mrb[0].mxu0
    %v299 = vadd.f32 %v116, %v298
    %v300 = vpop.f32.mrb[0].mxu0
    %v301 = vpop.f32.mrb[0].mxu0
    %v302 = vadd.f32 %v116, %v301
    %v303 = vpop.f32.mrb[0].mxu0
    %304 = vmatprep.mubr.bf16.mxu0 0
    %305 = vmatmul.mubr.bf16.gmra.mrb[0].mxu0 %v201
    %v306 = vpop.f32.mrb[0].mxu0
    %v307 = vadd.f32 %v116, %v306
    %v308 = vpop.f32.mrb[0].mxu0
    %v309 = vpop.f32.mrb[0].mxu0
    %v310 = vadd.f32 %v116, %v309
    %v311 = vpop.f32.mrb[0].mxu0
    %312 = vmatprep.mubr.bf16.mxu0 0
    %313 = vmatmul.mubr.bf16.gmra.mrb[0].mxu0 %v204
    %v314 = vpop.f32.mrb[0].mxu0
    %v315 = vadd.f32 %v116, %v314
    %v316 = vpop.f32.mrb[0].mxu0
    %v317 = vpop.f32.mrb[0].mxu0
    %v318 = vadd.f32 %v116, %v317
    %v319 = vpop.f32.mrb[0].mxu0
    %320 = vmatprep.mubr.bf16.mxu0 0
    %321 = vmatmul.mubr.bf16.gmra.mrb[0].mxu0 %v207
    %v322 = vpop.f32.mrb[0].mxu0
    %v323 = vadd.f32 %v116, %v322
    %v324 = vpop.f32.mrb[0].mxu0
    %v325 = vpop.f32.mrb[0].mxu0
    %v326 = vadd.f32 %v116, %v325
    %v327 = vpop.f32.mrb[0].mxu0
    %328 = vmatprep.mubr.bf16.mxu0 0
    %329 = vmatmul.mubr.bf16.gmra.mrb[0].mxu0 %v210
    %v330 = vpop.f32.mrb[0].mxu0
    %v331 = vadd.f32 %v116, %v330
    %v332 = vpop.f32.mrb[0].mxu0
    %v333 = vpop.f32.mrb[0].mxu0
    %v334 = vadd.f32 %v116, %v333
    %v335 = vpop.f32.mrb[0].mxu0
    %336 = vdwg.mxu0
    %v337 = vmax.f32 %v251, 0.0
    %v338 = vmax.f32 %v254, 0.0
    %v339 = vmax.f32 %v259, 0.0
    %v340 = vmax.f32 %v262, 0.0
    %v341 = vmax.f32 %v267, 0.0
    %v342 = vmax.f32 %v270, 0.0
    %v343 = vmax.f32 %v275, 0.0
    %v344 = vmax.f32 %v278, 0.0
    %v345 = vmax.f32 %v283, 0.0
    %v346 = vmax.f32 %v286, 0.0
    %v347 = vmax.f32 %v291, 0.0
    %v348 = vmax.f32 %v294, 0.0
    %v349 = vmax.f32 %v299, 0.0
    %v350 = vmax.f32 %v302, 0.0
    %v351 = vmax.f32 %v307, 0.0
    %v352 = vmax.f32 %v310, 0.0
    %v353 = vmax.f32 %v315, 0.0
    %v354 = vmax.f32 %v318, 0.0
    %v355 = vmax.f32 %v323, 0.0
    %v356 = vmax.f32 %v326, 0.0
    %v357 = vmax.f32 %v331, 0.0
    %v358 = vmax.f32 %v334, 0.0
    %v359 = vpack.c.bf16 %v338, %v337
    %v360 = vpack.c.bf16 %v340, %v339
    %v361 = vpack.c.bf16 %v342, %v341
    %v362 = vpack.c.bf16 %v344, %v343
    %v363 = vpack.c.bf16 %v346, %v345
    %v364 = vpack.c.bf16 %v348, %v347
    %v365 = vpack.c.bf16 %v350, %v349
    %v366 = vpack.c.bf16 %v352, %v351
    %v367 = vpack.c.bf16 %v354, %v353
    %v368 = vpack.c.bf16 %v356, %v355
    %v369 = vpack.c.bf16 %v358, %v357
    %v370 = vld [vmem:[%s3] sm:$0xff]
    %v371 = vld [vmem:[%s3 + $0x8] sm:$0xff]
    %v372 = vld [vmem:[%s3 + $0x10] sm:$0xff]
    %v373 = vld [vmem:[%s3 + $0x18] sm:$0xff]
    %v374 = vld [vmem:[%s3 + $0x20] sm:$0xff]
    %v375 = vld [vmem:[%s3 + $0x28] sm:$0xff]
    %v376 = vld [vmem:[%s3 + $0x30] sm:$0xff]
    %v377 = vld [vmem:[%s3 + $0x38] sm:$0xff]
    %v386 = vunpack.c.l.b16 %v370
    %v387 = vunpack.c.h.b16 %v370
    %v388 = vunpack.c.l.b16 %v371
    %v389 = vunpack.c.h.b16 %v371
    %v390 = vunpack.c.l.b16 %v372
    %v391 = vunpack.c.h.b16 %v372
    %v392 = vunpack.c.l.b16 %v373
    %v393 = vunpack.c.h.b16 %v373
    %v394 = vunpack.c.l.b16 %v374
    %v395 = vunpack.c.h.b16 %v374
    %v396 = vunpack.c.l.b16 %v375
    %v397 = vunpack.c.h.b16 %v375
    %v398 = vunpack.c.l.b16 %v376
    %v399 = vunpack.c.h.b16 %v376
    %v400 = vunpack.c.l.b16 %v377
    %v401 = vunpack.c.h.b16 %v377
    %v402 = vpack.c.b16 %v388, %v386
    %v403 = vpack.c.b16 %v389, %v387
    %v404 = vpack.c.b16 %v392, %v390
    %v405 = vpack.c.b16 %v393, %v391
    %v406 = vpack.c.b16 %v396, %v394
    %v407 = vpack.c.b16 %v397, %v395
    %v408 = vpack.c.b16 %v400, %v398
    %v409 = vpack.c.b16 %v401, %v399
    %vm418 = vcmask 523264
    %v420 = vsel %vm418, %v359, 0
    %v423 = vsel %vm418, %v360, 0
    %v426 = vsel %vm418, %v361, 0
    %v429 = vsel %vm418, %v362, 0
    %v432 = vsel %vm418, %v363, 0
    %v435 = vsel %vm418, %v364, 0
    %v438 = vsel %vm418, %v365, 0
    %v441 = vsel %vm418, %v366, 0
    %v444 = vsel %vm418, %v367, 0
    %v447 = vsel %vm418, %v368, 0
    %v450 = vsel %vm418, %v369, 0
    %452 = vmatprep.subr.bf16.mxu0 %v403
    %453 = vmatpush1.bf16.msra.mxu0 %v402
    %454 = vmatprep.subr.bf16.mxu0 %v405
    %455 = vmatpush1.bf16.msra.mxu0 %v404
    %456 = vmatprep.subr.bf16.mxu0 %v407
    %457 = vmatpush1.bf16.msra.mxu0 %v406
    %458 = vmatprep.subr.bf16.mxu0 %v409
    %459 = vmatpush1.bf16.msra.mxu0 %v408
    %460 = vmatprep.subr.bf16.mxu0 0
    %461 = vmatpush1.bf16.msra.mxu0 0
    %462 = vmatprep.subr.bf16.mxu0 0
    %463 = vmatpush1.bf16.msra.mxu0 0
    %464 = vmatprep.subr.bf16.mxu0 0
    %465 = vmatpush1.bf16.msra.mxu0 0
    %466 = vmatprep.subr.bf16.mxu0 0
    %467 = vmatpush1.bf16.msra.mxu0 0
    %468 = vmatprep.subr.bf16.mxu0 0
    %469 = vmatpush1.bf16.msra.mxu0 0
    %470 = vmatprep.subr.bf16.mxu0 0
    %471 = vmatpush1.bf16.msra.mxu0 0
    %472 = vmatprep.subr.bf16.mxu0 0
    %473 = vmatpush1.bf16.msra.mxu0 0
    %474 = vmatprep.subr.bf16.mxu0 0
    %475 = vmatpush1.bf16.msra.mxu0 0
    %476 = vmatprep.subr.bf16.mxu0 0
    %477 = vmatpush1.bf16.msra.mxu0 0
    %478 = vmatprep.subr.bf16.mxu0 0
    %479 = vmatpush1.bf16.msra.mxu0 0
    %480 = vmatprep.subr.bf16.mxu0 0
    %481 = vmatpush1.bf16.msra.mxu0 0
    %482 = vmatprep.subr.bf16.mxu0 0
    %483 = vmatpush1.bf16.msra.mxu0 0
    %484 = vmatprep.mubr.bf16.mxu0 0
    %485 = vmatmul.mubr.bf16.gmra.mrb[0].mxu0 %v420
    %v486 = vpop.f32.mrb[0].mxu0
    %v487 = vadd.f32 0.0, %v486
    %v488 = vpop.f32.mrb[0].mxu0
    %v489 = vpop.f32.mrb[0].mxu0
    %v490 = vadd.f32 0.0, %v489
    %v491 = vpop.f32.mrb[0].mxu0
    %v492 = vadd.f32 0.0, %v491
    %493 = vmatprep.mubr.bf16.mxu0 0
    %494 = vmatmul.mubr.bf16.gmra.mrb[0].mxu0 %v423
    %v495 = vpop.f32.mrb[0].mxu0
    %v496 = vadd.f32 0.0, %v495
    %v497 = vpop.f32.mrb[0].mxu0
    %v498 = vadd.f32 0.0, %v497
    %v499 = vpop.f32.mrb[0].mxu0
    %v500 = vadd.f32 0.0, %v499
    %v501 = vpop.f32.mrb[0].mxu0
    %v502 = vadd.f32 0.0, %v501
    %503 = vmatprep.mubr.bf16.mxu0 0
    %504 = vmatmul.mubr.bf16.gmra.mrb[0].mxu0 %v426
    %v505 = vpop.f32.mrb[0].mxu0
    %v506 = vadd.f32 0.0, %v505
    %v507 = vpop.f32.mrb[0].mxu0
    %v508 = vadd.f32 0.0, %v507
    %v509 = vpop.f32.mrb[0].mxu0
    %v510 = vadd.f32 0.0, %v509
    %v511 = vpop.f32.mrb[0].mxu0
    %v512 = vadd.f32 0.0, %v511
    %513 = vmatprep.mubr.bf16.mxu0 0
    %514 = vmatmul.mubr.bf16.gmra.mrb[0].mxu0 %v429
    %v515 = vpop.f32.mrb[0].mxu0
    %v516 = vadd.f32 0.0, %v515
    %v517 = vpop.f32.mrb[0].mxu0
    %v518 = vadd.f32 0.0, %v517
    %v519 = vpop.f32.mrb[0].mxu0
    %v520 = vadd.f32 0.0, %v519
    %v521 = vpop.f32.mrb[0].mxu0
    %v522 = vadd.f32 0.0, %v521
    %523 = vmatprep.mubr.bf16.mxu0 0
    %524 = vmatmul.mubr.bf16.gmra.mrb[0].mxu0 %v432
    %v525 = vpop.f32.mrb[0].mxu0
    %v526 = vadd.f32 0.0, %v525
    %v527 = vpop.f32.mrb[0].mxu0
    %v528 = vadd.f32 0.0, %v527
    %v529 = vpop.f32.mrb[0].mxu0
    %v530 = vadd.f32 0.0, %v529
    %v531 = vpop.f32.mrb[0].mxu0
    %v532 = vadd.f32 0.0, %v531
    %533 = vmatprep.mubr.bf16.mxu0 0
    %534 = vmatmul.mubr.bf16.gmra.mrb[0].mxu0 %v435
    %v535 = vpop.f32.mrb[0].mxu0
    %v536 = vadd.f32 0.0, %v535
    %v537 = vpop.f32.mrb[0].mxu0
    %v538 = vadd.f32 0.0, %v537
    %v539 = vpop.f32.mrb[0].mxu0
    %v540 = vadd.f32 0.0, %v539
    %v541 = vpop.f32.mrb[0].mxu0
    %v542 = vadd.f32 0.0, %v541
    %543 = vmatprep.mubr.bf16.mxu0 0
    %544 = vmatmul.mubr.bf16.gmra.mrb[0].mxu0 %v438
    %v545 = vpop.f32.mrb[0].mxu0
    %v546 = vadd.f32 0.0, %v545
    %v547 = vpop.f32.mrb[0].mxu0
    %v548 = vadd.f32 0.0, %v547
    %v549 = vpop.f32.mrb[0].mxu0
    %v550 = vadd.f32 0.0, %v549
    %v551 = vpop.f32.mrb[0].mxu0
    %v552 = vadd.f32 0.0, %v551
    %553 = vmatprep.mubr.bf16.mxu0 0
    %554 = vmatmul.mubr.bf16.gmra.mrb[0].mxu0 %v441
    %v555 = vpop.f32.mrb[0].mxu0
    %v556 = vadd.f32 0.0, %v555
    %v557 = vpop.f32.mrb[0].mxu0
    %v558 = vadd.f32 0.0, %v557
    %v559 = vpop.f32.mrb[0].mxu0
    %v560 = vadd.f32 0.0, %v559
    %v561 = vpop.f32.mrb[0].mxu0
    %v562 = vadd.f32 0.0, %v561
    %563 = vmatprep.mubr.bf16.mxu0 0
    %564 = vmatmul.mubr.bf16.gmra.mrb[0].mxu0 %v444
    %v565 = vpop.f32.mrb[0].mxu0
    %v566 = vadd.f32 0.0, %v565
    %v567 = vpop.f32.mrb[0].mxu0
    %v568 = vadd.f32 0.0, %v567
    %v569 = vpop.f32.mrb[0].mxu0
    %v570 = vadd.f32 0.0, %v569
    %v571 = vpop.f32.mrb[0].mxu0
    %v572 = vadd.f32 0.0, %v571
    %573 = vmatprep.mubr.bf16.mxu0 0
    %574 = vmatmul.mubr.bf16.gmra.mrb[0].mxu0 %v447
    %v575 = vpop.f32.mrb[0].mxu0
    %v576 = vadd.f32 0.0, %v575
    %v577 = vpop.f32.mrb[0].mxu0
    %v578 = vadd.f32 0.0, %v577
    %v579 = vpop.f32.mrb[0].mxu0
    %v580 = vadd.f32 0.0, %v579
    %v581 = vpop.f32.mrb[0].mxu0
    %v582 = vadd.f32 0.0, %v581
    %583 = vmatprep.mubr.bf16.mxu0 0
    %584 = vmatmul.mubr.bf16.gmra.mrb[0].mxu0 %v450
    %v585 = vpop.f32.mrb[0].mxu0
    %v586 = vadd.f32 0.0, %v585
    %v587 = vpop.f32.mrb[0].mxu0
    %v588 = vadd.f32 0.0, %v587
    %v589 = vpop.f32.mrb[0].mxu0
    %v590 = vadd.f32 0.0, %v589
    %v591 = vpop.f32.mrb[0].mxu0
    %v592 = vadd.f32 0.0, %v591
    %593 = vdwg.mxu0
    %616 = vrot.lane.b32.xlu0 %v487, 64
    %v617 = vpop.permute.xlu0 %616
    %618 = vrot.lane.b32.xlu0 %v490, 64
    %v619 = vpop.permute.xlu0 %618
    %620 = vrot.lane.b32.xlu0 %v496, 64
    %v621 = vpop.permute.xlu0 %620
    %622 = vrot.lane.b32.xlu0 %v500, 64
    %v623 = vpop.permute.xlu0 %622
    %624 = vrot.lane.b32.xlu0 %v506, 64
    %v625 = vpop.permute.xlu0 %624
    %626 = vrot.lane.b32.xlu0 %v510, 64
    %v627 = vpop.permute.xlu0 %626
    %628 = vrot.lane.b32.xlu0 %v516, 64
    %v629 = vpop.permute.xlu0 %628
    %630 = vrot.lane.b32.xlu0 %v520, 64
    %v631 = vpop.permute.xlu0 %630
    %632 = vrot.lane.b32.xlu0 %v526, 64
    %v633 = vpop.permute.xlu0 %632
    %634 = vrot.lane.b32.xlu0 %v530, 64
    %v635 = vpop.permute.xlu0 %634
    %636 = vrot.lane.b32.xlu0 %v536, 64
    %v637 = vpop.permute.xlu0 %636
    %638 = vrot.lane.b32.xlu0 %v540, 64
    %v639 = vpop.permute.xlu0 %638
    %640 = vrot.lane.b32.xlu0 %v546, 64
    %v641 = vpop.permute.xlu0 %640
    %642 = vrot.lane.b32.xlu0 %v550, 64
    %v643 = vpop.permute.xlu0 %642
    %644 = vrot.lane.b32.xlu0 %v556, 64
    %v645 = vpop.permute.xlu0 %644
    %646 = vrot.lane.b32.xlu0 %v560, 64
    %v647 = vpop.permute.xlu0 %646
    %648 = vrot.lane.b32.xlu0 %v566, 64
    %v649 = vpop.permute.xlu0 %648
    %650 = vrot.lane.b32.xlu0 %v570, 64
    %v651 = vpop.permute.xlu0 %650
    %652 = vrot.lane.b32.xlu0 %v576, 64
    %v653 = vpop.permute.xlu0 %652
    %654 = vrot.lane.b32.xlu0 %v580, 64
    %v655 = vpop.permute.xlu0 %654
    %656 = vrot.lane.b32.xlu0 %v586, 64
    %v657 = vpop.permute.xlu0 %656
    %658 = vrot.lane.b32.xlu0 %v590, 64
    %v659 = vpop.permute.xlu0 %658
    %v682 = vadd.f32 %v617, 0.0
    %v683 = vadd.f32 %v487, %v619
    %v684 = vadd.f32 %v490, %v621
    %v685 = vadd.f32 %v496, %v623
    %v686 = vadd.f32 %v500, %v625
    %v687 = vadd.f32 %v506, %v627
    %v688 = vadd.f32 %v510, %v629
    %v689 = vadd.f32 %v516, %v631
    %v690 = vadd.f32 %v520, %v633
    %v691 = vadd.f32 %v526, %v635
    %v692 = vadd.f32 %v530, %v637
    %v693 = vadd.f32 %v536, %v639
    %v694 = vadd.f32 %v540, %v641
    %v695 = vadd.f32 %v546, %v643
    %v696 = vadd.f32 %v550, %v645
    %v697 = vadd.f32 %v556, %v647
    %v698 = vadd.f32 %v560, %v649
    %v699 = vadd.f32 %v566, %v651
    %v700 = vadd.f32 %v570, %v653
    %v701 = vadd.f32 %v576, %v655
    %v702 = vadd.f32 %v580, %v657
    %v703 = vadd.f32 %v586, %v659
    %v704 = vadd.f32 %v682, %v492
    %v705 = vadd.f32 %v683, %v498
    %v706 = vadd.f32 %v684, %v502
    %v707 = vadd.f32 %v685, %v508
    %v708 = vadd.f32 %v686, %v512
    %v709 = vadd.f32 %v687, %v518
    %v710 = vadd.f32 %v688, %v522
    %v711 = vadd.f32 %v689, %v528
    %v712 = vadd.f32 %v690, %v532
    %v713 = vadd.f32 %v691, %v538
    %v714 = vadd.f32 %v692, %v542
    %v715 = vadd.f32 %v693, %v548
    %v716 = vadd.f32 %v694, %v552
    %v717 = vadd.f32 %v695, %v558
    %v718 = vadd.f32 %v696, %v562
    %v719 = vadd.f32 %v697, %v568
    %v720 = vadd.f32 %v698, %v572
    %v721 = vadd.f32 %v699, %v578
    %v722 = vadd.f32 %v700, %v582
    %v723 = vadd.f32 %v701, %v588
    %v724 = vadd.f32 %v702, %v592
    %v725 = vadd.f32 %v703, 0.0
    %v726 = vld [vmem:[%s4] sm:$0x1]
    %v728 = vlaneseq
    %v729 = vshrl.u32 %v728, 7
    %v730 = vsub.s32 0, %v729
    %v731 = vrot.slane %v726, %v730
    %v733 = vadd.f32 %v704, %v731
    %v734 = vadd.f32 %v705, %v731
    %v735 = vadd.f32 %v706, %v731
    %v736 = vadd.f32 %v707, %v731
    %v737 = vadd.f32 %v708, %v731
    %v738 = vadd.f32 %v709, %v731
    %v739 = vadd.f32 %v710, %v731
    %v740 = vadd.f32 %v711, %v731
    %v741 = vadd.f32 %v712, %v731
    %v742 = vadd.f32 %v713, %v731
    %v743 = vadd.f32 %v714, %v731
    %v744 = vadd.f32 %v715, %v731
    %v745 = vadd.f32 %v716, %v731
    %v746 = vadd.f32 %v717, %v731
    %v747 = vadd.f32 %v718, %v731
    %v748 = vadd.f32 %v719, %v731
    %v749 = vadd.f32 %v720, %v731
    %v750 = vadd.f32 %v721, %v731
    %v751 = vadd.f32 %v722, %v731
    %v752 = vadd.f32 %v723, %v731
    %v753 = vadd.f32 %v724, %v731
    %v754 = vadd.f32 %v725, %v731
    %v755 = vmax.f32 %v733, 0.0
    %v756 = vmax.f32 %v734, 0.0
    %v757 = vmax.f32 %v735, 0.0
    %v758 = vmax.f32 %v736, 0.0
    %v759 = vmax.f32 %v737, 0.0
    %v760 = vmax.f32 %v738, 0.0
    %v761 = vmax.f32 %v739, 0.0
    %v762 = vmax.f32 %v740, 0.0
    %v763 = vmax.f32 %v741, 0.0
    %v764 = vmax.f32 %v742, 0.0
    %v765 = vmax.f32 %v743, 0.0
    %v766 = vmax.f32 %v744, 0.0
    %v767 = vmax.f32 %v745, 0.0
    %v768 = vmax.f32 %v746, 0.0
    %v769 = vmax.f32 %v747, 0.0
    %v770 = vmax.f32 %v748, 0.0
    %v771 = vmax.f32 %v749, 0.0
    %v772 = vmax.f32 %v750, 0.0
    %v773 = vmax.f32 %v751, 0.0
    %v774 = vmax.f32 %v752, 0.0
    %v775 = vmax.f32 %v753, 0.0
    %v776 = vmax.f32 %v754, 0.0
    %v777 = vpack.c.bf16 %v756, %v755
    %v778 = vpack.c.bf16 %v758, %v757
    %v779 = vpack.c.bf16 %v760, %v759
    %v780 = vpack.c.bf16 %v762, %v761
    %v781 = vpack.c.bf16 %v764, %v763
    %v782 = vpack.c.bf16 %v766, %v765
    %v783 = vpack.c.bf16 %v768, %v767
    %v784 = vpack.c.bf16 %v770, %v769
    %v785 = vpack.c.bf16 %v772, %v771
    %v786 = vpack.c.bf16 %v774, %v773
    %v787 = vpack.c.bf16 %v776, %v775
    %v788 = vld [vmem:[#allocation2] sm:$0xff]
    %v789 = vld [vmem:[#allocation2 + $0x8] sm:$0xff]
    %v790 = vld [vmem:[#allocation2 + $0x10] sm:$0xff]
    %v791 = vld [vmem:[#allocation2 + $0x18] sm:$0xff]
    %v792 = vld [vmem:[#allocation2 + $0x20] sm:$0xff]
    %v793 = vld [vmem:[#allocation2 + $0x28] sm:$0xff]
    %v794 = vld [vmem:[#allocation2 + $0x30] sm:$0xff]
    %v795 = vld [vmem:[#allocation2 + $0x38] sm:$0xff]
    %v804 = vunpack.c.l.b16 %v788
    %v805 = vunpack.c.h.b16 %v788
    %v806 = vunpack.c.l.b16 %v789
    %v807 = vunpack.c.h.b16 %v789
    %v808 = vunpack.c.l.b16 %v790
    %v809 = vunpack.c.h.b16 %v790
    %v810 = vunpack.c.l.b16 %v791
    %v811 = vunpack.c.h.b16 %v791
    %v812 = vunpack.c.l.b16 %v792
    %v813 = vunpack.c.h.b16 %v792
    %v814 = vunpack.c.l.b16 %v793
    %v815 = vunpack.c.h.b16 %v793
    %v816 = vunpack.c.l.b16 %v794
    %v817 = vunpack.c.h.b16 %v794
    %v818 = vunpack.c.l.b16 %v795
    %v819 = vunpack.c.h.b16 %v795
    %v820 = vpack.c.b16 %v806, %v804
    %v821 = vpack.c.b16 %v807, %v805
    %v822 = vpack.c.b16 %v810, %v808
    %v823 = vpack.c.b16 %v811, %v809
    %v824 = vpack.c.b16 %v814, %v812
    %v825 = vpack.c.b16 %v815, %v813
    %v826 = vpack.c.b16 %v818, %v816
    %v827 = vpack.c.b16 %v819, %v817
    %v837 = vsel %vm418, %v777, 0
    %v840 = vsel %vm418, %v778, 0
    %v843 = vsel %vm418, %v779, 0
    %v846 = vsel %vm418, %v780, 0
    %v849 = vsel %vm418, %v781, 0
    %v852 = vsel %vm418, %v782, 0
    %v855 = vsel %vm418, %v783, 0
    %v858 = vsel %vm418, %v784, 0
    %v861 = vsel %vm418, %v785, 0
    %v864 = vsel %vm418, %v786, 0
    %v867 = vsel %vm418, %v787, 0
    %869 = vmatprep.subr.bf16.mxu0 %v821
    %870 = vmatpush1.bf16.msra.mxu0 %v820
    %871 = vmatprep.subr.bf16.mxu0 %v823
    %872 = vmatpush1.bf16.msra.mxu0 %v822
    %873 = vmatprep.subr.bf16.mxu0 %v825
    %874 = vmatpush1.bf16.msra.mxu0 %v824
    %875 = vmatprep.subr.bf16.mxu0 %v827
    %876 = vmatpush1.bf16.msra.mxu0 %v826
    %877 = vmatprep.subr.bf16.mxu0 0
    %878 = vmatpush1.bf16.msra.mxu0 0
    %879 = vmatprep.subr.bf16.mxu0 0
    %880 = vmatpush1.bf16.msra.mxu0 0
    %881 = vmatprep.subr.bf16.mxu0 0
    %882 = vmatpush1.bf16.msra.mxu0 0
    %883 = vmatprep.subr.bf16.mxu0 0
    %884 = vmatpush1.bf16.msra.mxu0 0
    %885 = vmatprep.subr.bf16.mxu0 0
    %886 = vmatpush1.bf16.msra.mxu0 0
    %887 = vmatprep.subr.bf16.mxu0 0
    %888 = vmatpush1.bf16.msra.mxu0 0
    %889 = vmatprep.subr.bf16.mxu0 0
    %890 = vmatpush1.bf16.msra.mxu0 0
    %891 = vmatprep.subr.bf16.mxu0 0
    %892 = vmatpush1.bf16.msra.mxu0 0
    %893 = vmatprep.subr.bf16.mxu0 0
    %894 = vmatpush1.bf16.msra.mxu0 0
    %895 = vmatprep.subr.bf16.mxu0 0
    %896 = vmatpush1.bf16.msra.mxu0 0
    %897 = vmatprep.subr.bf16.mxu0 0
    %898 = vmatpush1.bf16.msra.mxu0 0
    %899 = vmatprep.subr.bf16.mxu0 0
    %900 = vmatpush1.bf16.msra.mxu0 0
    %901 = vmatprep.mubr.bf16.mxu0 0
    %902 = vmatmul.mubr.bf16.gmra.mrb[0].mxu0 %v837
    %v903 = vpop.f32.mrb[0].mxu0
    %v904 = vadd.f32 0.0, %v903
    %v905 = vpop.f32.mrb[0].mxu0
    %v906 = vpop.f32.mrb[0].mxu0
    %v907 = vadd.f32 0.0, %v906
    %v908 = vpop.f32.mrb[0].mxu0
    %v909 = vadd.f32 0.0, %v908
    %910 = vmatprep.mubr.bf16.mxu0 0
    %911 = vmatmul.mubr.bf16.gmra.mrb[0].mxu0 %v840
    %v912 = vpop.f32.mrb[0].mxu0
    %v913 = vadd.f32 0.0, %v912
    %v914 = vpop.f32.mrb[0].mxu0
    %v915 = vadd.f32 0.0, %v914
    %v916 = vpop.f32.mrb[0].mxu0
    %v917 = vadd.f32 0.0, %v916
    %v918 = vpop.f32.mrb[0].mxu0
    %v919 = vadd.f32 0.0, %v918
    %920 = vmatprep.mubr.bf16.mxu0 0
    %921 = vmatmul.mubr.bf16.gmra.mrb[0].mxu0 %v843
    %v922 = vpop.f32.mrb[0].mxu0
    %v923 = vadd.f32 0.0, %v922
    %v924 = vpop.f32.mrb[0].mxu0
    %v925 = vadd.f32 0.0, %v924
    %v926 = vpop.f32.mrb[0].mxu0
    %v927 = vadd.f32 0.0, %v926
    %v928 = vpop.f32.mrb[0].mxu0
    %v929 = vadd.f32 0.0, %v928
    %930 = vmatprep.mubr.bf16.mxu0 0
    %931 = vmatmul.mubr.bf16.gmra.mrb[0].mxu0 %v846
    %v932 = vpop.f32.mrb[0].mxu0
    %v933 = vadd.f32 0.0, %v932
    %v934 = vpop.f32.mrb[0].mxu0
    %v935 = vadd.f32 0.0, %v934
    %v936 = vpop.f32.mrb[0].mxu0
    %v937 = vadd.f32 0.0, %v936
    %v938 = vpop.f32.mrb[0].mxu0
    %v939 = vadd.f32 0.0, %v938
    %940 = vmatprep.mubr.bf16.mxu0 0
    %941 = vmatmul.mubr.bf16.gmra.mrb[0].mxu0 %v849
    %v942 = vpop.f32.mrb[0].mxu0
    %v943 = vadd.f32 0.0, %v942
    %v944 = vpop.f32.mrb[0].mxu0
    %v945 = vadd.f32 0.0, %v944
    %v946 = vpop.f32.mrb[0].mxu0
    %v947 = vadd.f32 0.0, %v946
    %v948 = vpop.f32.mrb[0].mxu0
    %v949 = vadd.f32 0.0, %v948
    %950 = vmatprep.mubr.bf16.mxu0 0
    %951 = vmatmul.mubr.bf16.gmra.mrb[0].mxu0 %v852
    %v952 = vpop.f32.mrb[0].mxu0
    %v953 = vadd.f32 0.0, %v952
    %v954 = vpop.f32.mrb[0].mxu0
    %v955 = vadd.f32 0.0, %v954
    %v956 = vpop.f32.mrb[0].mxu0
    %v957 = vadd.f32 0.0, %v956
    %v958 = vpop.f32.mrb[0].mxu0
    %v959 = vadd.f32 0.0, %v958
    %960 = vmatprep.mubr.bf16.mxu0 0
    %961 = vmatmul.mubr.bf16.gmra.mrb[0].mxu0 %v855
    %v962 = vpop.f32.mrb[0].mxu0
    %v963 = vadd.f32 0.0, %v962
    %v964 = vpop.f32.mrb[0].mxu0
    %v965 = vadd.f32 0.0, %v964
    %v966 = vpop.f32.mrb[0].mxu0
    %v967 = vadd.f32 0.0, %v966
    %v968 = vpop.f32.mrb[0].mxu0
    %v969 = vadd.f32 0.0, %v968
    %970 = vmatprep.mubr.bf16.mxu0 0
    %971 = vmatmul.mubr.bf16.gmra.mrb[0].mxu0 %v858
    %v972 = vpop.f32.mrb[0].mxu0
    %v973 = vadd.f32 0.0, %v972
    %v974 = vpop.f32.mrb[0].mxu0
    %v975 = vadd.f32 0.0, %v974
    %v976 = vpop.f32.mrb[0].mxu0
    %v977 = vadd.f32 0.0, %v976
    %v978 = vpop.f32.mrb[0].mxu0
    %v979 = vadd.f32 0.0, %v978
    %980 = vmatprep.mubr.bf16.mxu0 0
    %981 = vmatmul.mubr.bf16.gmra.mrb[0].mxu0 %v861
    %v982 = vpop.f32.mrb[0].mxu0
    %v983 = vadd.f32 0.0, %v982
    %v984 = vpop.f32.mrb[0].mxu0
    %v985 = vadd.f32 0.0, %v984
    %v986 = vpop.f32.mrb[0].mxu0
    %v987 = vadd.f32 0.0, %v986
    %v988 = vpop.f32.mrb[0].mxu0
    %v989 = vadd.f32 0.0, %v988
    %990 = vmatprep.mubr.bf16.mxu0 0
    %991 = vmatmul.mubr.bf16.gmra.mrb[0].mxu0 %v864
    %v992 = vpop.f32.mrb[0].mxu0
    %v993 = vadd.f32 0.0, %v992
    %v994 = vpop.f32.mrb[0].mxu0
    %v995 = vadd.f32 0.0, %v994
    %v996 = vpop.f32.mrb[0].mxu0
    %v997 = vadd.f32 0.0, %v996
    %v998 = vpop.f32.mrb[0].mxu0
    %v999 = vadd.f32 0.0, %v998
    %1000 = vmatprep.mubr.bf16.mxu0 0
    %1001 = vmatmul.mubr.bf16.gmra.mrb[0].mxu0 %v867
    %v1002 = vpop.f32.mrb[0].mxu0
    %v1003 = vadd.f32 0.0, %v1002
    %v1004 = vpop.f32.mrb[0].mxu0
    %v1005 = vadd.f32 0.0, %v1004
    %v1006 = vpop.f32.mrb[0].mxu0
    %v1007 = vadd.f32 0.0, %v1006
    %v1008 = vpop.f32.mrb[0].mxu0
    %v1009 = vadd.f32 0.0, %v1008
    %1010 = vdwg.mxu0
    %1033 = vrot.lane.b32.xlu0 %v904, 64
    %v1034 = vpop.permute.xlu0 %1033
    %1035 = vrot.lane.b32.xlu0 %v907, 64
    %v1036 = vpop.permute.xlu0 %1035
    %1037 = vrot.lane.b32.xlu0 %v913, 64
    %v1038 = vpop.permute.xlu0 %1037
    %1039 = vrot.lane.b32.xlu0 %v917, 64
    %v1040 = vpop.permute.xlu0 %1039
    %1041 = vrot.lane.b32.xlu0 %v923, 64
    %v1042 = vpop.permute.xlu0 %1041
    %1043 = vrot.lane.b32.xlu0 %v927, 64
    %v1044 = vpop.permute.xlu0 %1043
    %1045 = vrot.lane.b32.xlu0 %v933, 64
    %v1046 = vpop.permute.xlu0 %1045
    %1047 = vrot.lane.b32.xlu0 %v937, 64
    %v1048 = vpop.permute.xlu0 %1047
    %1049 = vrot.lane.b32.xlu0 %v943, 64
    %v1050 = vpop.permute.xlu0 %1049
    %1051 = vrot.lane.b32.xlu0 %v947, 64
    %v1052 = vpop.permute.xlu0 %1051
    %1053 = vrot.lane.b32.xlu0 %v953, 64
    %v1054 = vpop.permute.xlu0 %1053
    %1055 = vrot.lane.b32.xlu0 %v957, 64
    %v1056 = vpop.permute.xlu0 %1055
    %1057 = vrot.lane.b32.xlu0 %v963, 64
    %v1058 = vpop.permute.xlu0 %1057
    %1059 = vrot.lane.b32.xlu0 %v967, 64
    %v1060 = vpop.permute.xlu0 %1059
    %1061 = vrot.lane.b32.xlu0 %v973, 64
    %v1062 = vpop.permute.xlu0 %1061
    %1063 = vrot.lane.b32.xlu0 %v977, 64
    %v1064 = vpop.permute.xlu0 %1063
    %1065 = vrot.lane.b32.xlu0 %v983, 64
    %v1066 = vpop.permute.xlu0 %1065
    %1067 = vrot.lane.b32.xlu0 %v987, 64
    %v1068 = vpop.permute.xlu0 %1067
    %1069 = vrot.lane.b32.xlu0 %v993, 64
    %v1070 = vpop.permute.xlu0 %1069
    %1071 = vrot.lane.b32.xlu0 %v997, 64
    %v1072 = vpop.permute.xlu0 %1071
    %1073 = vrot.lane.b32.xlu0 %v1003, 64
    %v1074 = vpop.permute.xlu0 %1073
    %1075 = vrot.lane.b32.xlu0 %v1007, 64
    %v1076 = vpop.permute.xlu0 %1075
    %v1099 = vadd.f32 %v1034, 0.0
    %v1100 = vadd.f32 %v904, %v1036
    %v1101 = vadd.f32 %v907, %v1038
    %v1102 = vadd.f32 %v913, %v1040
    %v1103 = vadd.f32 %v917, %v1042
    %v1104 = vadd.f32 %v923, %v1044
    %v1105 = vadd.f32 %v927, %v1046
    %v1106 = vadd.f32 %v933, %v1048
    %v1107 = vadd.f32 %v937, %v1050
    %v1108 = vadd.f32 %v943, %v1052
    %v1109 = vadd.f32 %v947, %v1054
    %v1110 = vadd.f32 %v953, %v1056
    %v1111 = vadd.f32 %v957, %v1058
    %v1112 = vadd.f32 %v963, %v1060
    %v1113 = vadd.f32 %v967, %v1062
    %v1114 = vadd.f32 %v973, %v1064
    %v1115 = vadd.f32 %v977, %v1066
    %v1116 = vadd.f32 %v983, %v1068
    %v1117 = vadd.f32 %v987, %v1070
    %v1118 = vadd.f32 %v993, %v1072
    %v1119 = vadd.f32 %v997, %v1074
    %v1120 = vadd.f32 %v1003, %v1076
    %v1121 = vadd.f32 %v1099, %v909
    %v1122 = vadd.f32 %v1100, %v915
    %v1123 = vadd.f32 %v1101, %v919
    %v1124 = vadd.f32 %v1102, %v925
    %v1125 = vadd.f32 %v1103, %v929
    %v1126 = vadd.f32 %v1104, %v935
    %v1127 = vadd.f32 %v1105, %v939
    %v1128 = vadd.f32 %v1106, %v945
    %v1129 = vadd.f32 %v1107, %v949
    %v1130 = vadd.f32 %v1108, %v955
    %v1131 = vadd.f32 %v1109, %v959
    %v1132 = vadd.f32 %v1110, %v965
    %v1133 = vadd.f32 %v1111, %v969
    %v1134 = vadd.f32 %v1112, %v975
    %v1135 = vadd.f32 %v1113, %v979
    %v1136 = vadd.f32 %v1114, %v985
    %v1137 = vadd.f32 %v1115, %v989
    %v1138 = vadd.f32 %v1116, %v995
    %v1139 = vadd.f32 %v1117, %v999
    %v1140 = vadd.f32 %v1118, %v1005
    %v1141 = vadd.f32 %v1119, %v1009
    %v1142 = vadd.f32 %v1120, 0.0
    %v1143 = vld [vmem:[%s6] sm:$0x1]
    %v1145 = vlaneseq
    %v1146 = vshrl.u32 %v1145, 7
    %v1147 = vsub.s32 0, %v1146
    %v1148 = vrot.slane %v1143, %v1147
    %v1150 = vadd.f32 %v1121, %v1148
    %v1151 = vadd.f32 %v1122, %v1148
    %v1152 = vadd.f32 %v1123, %v1148
    %v1153 = vadd.f32 %v1124, %v1148
    %v1154 = vadd.f32 %v1125, %v1148
    %v1155 = vadd.f32 %v1126, %v1148
    %v1156 = vadd.f32 %v1127, %v1148
    %v1157 = vadd.f32 %v1128, %v1148
    %v1158 = vadd.f32 %v1129, %v1148
    %v1159 = vadd.f32 %v1130, %v1148
    %v1160 = vadd.f32 %v1131, %v1148
    %v1161 = vadd.f32 %v1132, %v1148
    %v1162 = vadd.f32 %v1133, %v1148
    %v1163 = vadd.f32 %v1134, %v1148
    %v1164 = vadd.f32 %v1135, %v1148
    %v1165 = vadd.f32 %v1136, %v1148
    %v1166 = vadd.f32 %v1137, %v1148
    %v1167 = vadd.f32 %v1138, %v1148
    %v1168 = vadd.f32 %v1139, %v1148
    %v1169 = vadd.f32 %v1140, %v1148
    %v1170 = vadd.f32 %v1141, %v1148
    %v1171 = vadd.f32 %v1142, %v1148
    %v1172 = vmax.f32 %v1150, 0.0
    %v1173 = vmax.f32 %v1151, 0.0
    %v1174 = vmax.f32 %v1152, 0.0
    %v1175 = vmax.f32 %v1153, 0.0
    %v1176 = vmax.f32 %v1154, 0.0
    %v1177 = vmax.f32 %v1155, 0.0
    %v1178 = vmax.f32 %v1156, 0.0
    %v1179 = vmax.f32 %v1157, 0.0
    %v1180 = vmax.f32 %v1158, 0.0
    %v1181 = vmax.f32 %v1159, 0.0
    %v1182 = vmax.f32 %v1160, 0.0
    %v1183 = vmax.f32 %v1161, 0.0
    %v1184 = vmax.f32 %v1162, 0.0
    %v1185 = vmax.f32 %v1163, 0.0
    %v1186 = vmax.f32 %v1164, 0.0
    %v1187 = vmax.f32 %v1165, 0.0
    %v1188 = vmax.f32 %v1166, 0.0
    %v1189 = vmax.f32 %v1167, 0.0
    %v1190 = vmax.f32 %v1168, 0.0
    %v1191 = vmax.f32 %v1169, 0.0
    %v1192 = vmax.f32 %v1170, 0.0
    %v1193 = vmax.f32 %v1171, 0.0
    %v1194 = vpack.c.bf16 %v1172, %v1172
    %v1195 = vpack.c.bf16 %v1173, %v1173
    %v1196 = vpack.c.bf16 %v1174, %v1174
    %v1197 = vpack.c.bf16 %v1175, %v1175
    %v1198 = vpack.c.bf16 %v1176, %v1176
    %v1199 = vpack.c.bf16 %v1177, %v1177
    %v1200 = vpack.c.bf16 %v1178, %v1178
    %v1201 = vpack.c.bf16 %v1179, %v1179
    %v1202 = vpack.c.bf16 %v1180, %v1180
    %v1203 = vpack.c.bf16 %v1181, %v1181
    %v1204 = vpack.c.bf16 %v1182, %v1182
    %v1205 = vpack.c.bf16 %v1183, %v1183
    %v1206 = vpack.c.bf16 %v1184, %v1184
    %v1207 = vpack.c.bf16 %v1185, %v1185
    %v1208 = vpack.c.bf16 %v1186, %v1186
    %v1209 = vpack.c.bf16 %v1187, %v1187
    %v1210 = vpack.c.bf16 %v1188, %v1188
    %v1211 = vpack.c.bf16 %v1189, %v1189
    %v1212 = vpack.c.bf16 %v1190, %v1190
    %v1213 = vpack.c.bf16 %v1191, %v1191
    %v1214 = vpack.c.bf16 %v1192, %v1192
    %v1215 = vpack.c.bf16 %v1193, %v1193
    %v1216 = vld [vmem:[%s7] sm:$0xf]
    %v1217 = vld [vmem:[%s7 + $0x4] sm:$0xf]
    %v1218 = vld [vmem:[%s7 + $0x8] sm:$0xf]
    %v1219 = vld [vmem:[%s7 + $0xc] sm:$0xf]
    %v1220 = vld [vmem:[%s7 + $0x10] sm:$0xf]
    %v1221 = vld [vmem:[%s7 + $0x14] sm:$0xf]
    %v1222 = vld [vmem:[%s7 + $0x18] sm:$0xf]
    %v1223 = vld [vmem:[%s7 + $0x1c] sm:$0xf]
    %v1224 = vld [vmem:[%s7 + $0x20] sm:$0xf]
    %v1225 = vld [vmem:[%s7 + $0x24] sm:$0xf]
    %v1226 = vld [vmem:[%s7 + $0x28] sm:$0xf]
    %v1227 = vld [vmem:[%s7 + $0x2c] sm:$0xf]
    %v1228 = vld [vmem:[%s7 + $0x30] sm:$0xf]
    %v1229 = vld [vmem:[%s7 + $0x34] sm:$0xf]
    %v1230 = vld [vmem:[%s7 + $0x38] sm:$0xf]
    %v1231 = vld [vmem:[%s7 + $0x3c] sm:$0xf]
    %v1232 = vld [vmem:[%s7 + $0x40] sm:$0xf]
    %v1233 = vld [vmem:[%s7 + $0x44] sm:$0xf]
    %v1234 = vld [vmem:[%s7 + $0x48] sm:$0xf]
    %v1235 = vld [vmem:[%s7 + $0x4c] sm:$0xf]
    %v1236 = vld [vmem:[%s7 + $0x50] sm:$0xf]
    %v1237 = vld [vmem:[%s7 + $0x54] sm:$0xf]
    %v1238 = vld [vmem:[%s7 + $0x58] sm:$0xf]
    %v1239 = vld [vmem:[%s7 + $0x5c] sm:$0xf]
    %v1240 = vld [vmem:[%s7 + $0x60] sm:$0xf]
    %v1241 = vld [vmem:[%s7 + $0x64] sm:$0xf]
    %v1242 = vld [vmem:[%s7 + $0x68] sm:$0xf]
    %v1243 = vld [vmem:[%s7 + $0x6c] sm:$0xf]
    %v1244 = vld [vmem:[%s7 + $0x70] sm:$0xf]
    %v1245 = vld [vmem:[%s7 + $0x74] sm:$0xf]
    %v1246 = vld [vmem:[%s7 + $0x78] sm:$0xf]
    %v1247 = vld [vmem:[%s7 + $0x7c] sm:$0xf]
    %v1248 = vld [vmem:[%s7 + $0x80] sm:$0xf]
    %v1249 = vld [vmem:[%s7 + $0x84] sm:$0xf]
    %v1250 = vld [vmem:[%s7 + $0x88] sm:$0xf]
    %v1251 = vld [vmem:[%s7 + $0x8c] sm:$0xf]
    %v1252 = vld [vmem:[%s7 + $0x90] sm:$0xf]
    %v1253 = vld [vmem:[%s7 + $0x94] sm:$0xf]
    %v1254 = vld [vmem:[%s7 + $0x98] sm:$0xf]
    %v1255 = vld [vmem:[%s7 + $0x9c] sm:$0xf]
    %v1256 = vld [vmem:[%s7 + $0xa0] sm:$0xf]
    %v1257 = vld [vmem:[%s7 + $0xa4] sm:$0xf]
    %v1258 = vld [vmem:[%s7 + $0xa8] sm:$0xf]
    %v1259 = vld [vmem:[%s7 + $0xac] sm:$0xf]
    %v1260 = vld [vmem:[%s7 + $0xb0] sm:$0xf]
    %v1261 = vld [vmem:[%s7 + $0xb4] sm:$0xf]
    %v1262 = vld [vmem:[%s7 + $0xb8] sm:$0xf]
    %v1263 = vld [vmem:[%s7 + $0xbc] sm:$0xf]
    %v1264 = vld [vmem:[%s7 + $0xc0] sm:$0xf]
    %v1265 = vld [vmem:[%s7 + $0xc4] sm:$0xf]
    %v1266 = vld [vmem:[%s7 + $0xc8] sm:$0xf]
    %v1267 = vld [vmem:[%s7 + $0xcc] sm:$0xf]
    %v1268 = vld [vmem:[%s7 + $0xd0] sm:$0xf]
    %v1269 = vld [vmem:[%s7 + $0xd4] sm:$0xf]
    %v1270 = vld [vmem:[%s7 + $0xd8] sm:$0xf]
    %v1271 = vld [vmem:[%s7 + $0xdc] sm:$0xf]
    %v1272 = vld [vmem:[%s7 + $0xe0] sm:$0xf]
    %v1273 = vld [vmem:[%s7 + $0xe4] sm:$0xf]
    %v1274 = vld [vmem:[%s7 + $0xe8] sm:$0xf]
    %v1275 = vld [vmem:[%s7 + $0xec] sm:$0xf]
    %v1276 = vld [vmem:[%s7 + $0xf0] sm:$0xf]
    %v1277 = vld [vmem:[%s7 + $0xf4] sm:$0xf]
    %v1278 = vld [vmem:[%s7 + $0xf8] sm:$0xf]
    %v1279 = vld [vmem:[%s7 + $0xfc] sm:$0xf]
    %v1280 = vld [vmem:[%s7 + $0x100] sm:$0xf]
    %v1281 = vld [vmem:[%s7 + $0x104] sm:$0xf]
    %v1282 = vld [vmem:[%s7 + $0x108] sm:$0xf]
    %v1283 = vld [vmem:[%s7 + $0x10c] sm:$0xf]
    %v1284 = vld [vmem:[%s7 + $0x110] sm:$0xf]
    %v1285 = vld [vmem:[%s7 + $0x114] sm:$0xf]
    %v1286 = vld [vmem:[%s7 + $0x118] sm:$0xf]
    %v1287 = vld [vmem:[%s7 + $0x11c] sm:$0xf]
    %v1288 = vld [vmem:[%s7 + $0x120] sm:$0xf]
    %v1289 = vld [vmem:[%s7 + $0x124] sm:$0xf]
    %v1290 = vld [vmem:[%s7 + $0x128] sm:$0xf]
    %v1291 = vld [vmem:[%s7 + $0x12c] sm:$0xf]
    %v1292 = vld [vmem:[%s7 + $0x130] sm:$0xf]
    %v1293 = vld [vmem:[%s7 + $0x134] sm:$0xf]
    %v1294 = vld [vmem:[%s7 + $0x138] sm:$0xf]
    %v1295 = vld [vmem:[%s7 + $0x13c] sm:$0xf]
    %v1296 = vld [vmem:[%s7 + $0x140] sm:$0xf]
    %v1297 = vld [vmem:[%s7 + $0x144] sm:$0xf]
    %v1298 = vld [vmem:[%s7 + $0x148] sm:$0xf]
    %v1299 = vld [vmem:[%s7 + $0x14c] sm:$0xf]
    %v1300 = vld [vmem:[%s7 + $0x150] sm:$0xf]
    %v1301 = vld [vmem:[%s7 + $0x154] sm:$0xf]
    %v1302 = vld [vmem:[%s7 + $0x158] sm:$0xf]
    %v1303 = vld [vmem:[%s7 + $0x15c] sm:$0xf]
    %v1304 = vld [vmem:[%s7 + $0x160] sm:$0xf]
    %v1305 = vld [vmem:[%s7 + $0x164] sm:$0xf]
    %v1306 = vld [vmem:[%s7 + $0x168] sm:$0xf]
    %v1307 = vld [vmem:[%s7 + $0x16c] sm:$0xf]
    %v1308 = vld [vmem:[%s7 + $0x170] sm:$0xf]
    %v1309 = vld [vmem:[%s7 + $0x174] sm:$0xf]
    %v1310 = vld [vmem:[%s7 + $0x178] sm:$0xf]
    %v1311 = vld [vmem:[%s7 + $0x17c] sm:$0xf]
    %v1312 = vld [vmem:[%s7 + $0x180] sm:$0xf]
    %v1313 = vld [vmem:[%s7 + $0x184] sm:$0xf]
    %v1314 = vld [vmem:[%s7 + $0x188] sm:$0xf]
    %v1315 = vld [vmem:[%s7 + $0x18c] sm:$0xf]
    %v1316 = vld [vmem:[%s7 + $0x190] sm:$0xf]
    %v1317 = vld [vmem:[%s7 + $0x194] sm:$0xf]
    %v1318 = vld [vmem:[%s7 + $0x198] sm:$0xf]
    %v1319 = vld [vmem:[%s7 + $0x19c] sm:$0xf]
    %v1320 = vld [vmem:[%s7 + $0x1a0] sm:$0xf]
    %v1321 = vld [vmem:[%s7 + $0x1a4] sm:$0xf]
    %v1322 = vld [vmem:[%s7 + $0x1a8] sm:$0xf]
    %v1323 = vld [vmem:[%s7 + $0x1ac] sm:$0xf]
    %v1324 = vld [vmem:[%s7 + $0x1b0] sm:$0xf]
    %v1325 = vld [vmem:[%s7 + $0x1b4] sm:$0xf]
    %v1326 = vld [vmem:[%s7 + $0x1b8] sm:$0xf]
    %v1327 = vld [vmem:[%s7 + $0x1bc] sm:$0xf]
    %v1328 = vld [vmem:[%s7 + $0x1c0] sm:$0xf]
    %v1329 = vld [vmem:[%s7 + $0x1c4] sm:$0xf]
    %v1330 = vld [vmem:[%s7 + $0x1c8] sm:$0xf]
    %v1331 = vld [vmem:[%s7 + $0x1cc] sm:$0xf]
    %v1332 = vld [vmem:[%s7 + $0x1d0] sm:$0xf]
    %v1333 = vld [vmem:[%s7 + $0x1d4] sm:$0xf]
    %v1334 = vld [vmem:[%s7 + $0x1d8] sm:$0xf]
    %v1335 = vld [vmem:[%s7 + $0x1dc] sm:$0xf]
    %v1336 = vld [vmem:[%s7 + $0x1e0] sm:$0xf]
    %v1337 = vld [vmem:[%s7 + $0x1e4] sm:$0xf]
    %v1338 = vld [vmem:[%s7 + $0x1e8] sm:$0xf]
    %v1339 = vld [vmem:[%s7 + $0x1ec] sm:$0xf]
    %v1340 = vld [vmem:[%s7 + $0x1f0] sm:$0xf]
    %v1341 = vld [vmem:[%s7 + $0x1f4] sm:$0xf]
    %v1342 = vld [vmem:[%s7 + $0x1f8] sm:$0xf]
    %v1343 = vld [vmem:[%s7 + $0x1fc] sm:$0xf]
    %v1344 = vld [vmem:[%s7 + $0x200] sm:$0xf]
    %v1345 = vld [vmem:[%s7 + $0x204] sm:$0xf]
    %v1346 = vld [vmem:[%s7 + $0x208] sm:$0xf]
    %v1347 = vld [vmem:[%s7 + $0x20c] sm:$0xf]
    %v1348 = vld [vmem:[%s7 + $0x210] sm:$0xf]
    %v1349 = vld [vmem:[%s7 + $0x214] sm:$0xf]
    %v1350 = vld [vmem:[%s7 + $0x218] sm:$0xf]
    %v1351 = vld [vmem:[%s7 + $0x21c] sm:$0xf]
    %v1352 = vld [vmem:[%s7 + $0x220] sm:$0xf]
    %v1353 = vld [vmem:[%s7 + $0x224] sm:$0xf]
    %v1354 = vld [vmem:[%s7 + $0x228] sm:$0xf]
    %v1355 = vld [vmem:[%s7 + $0x22c] sm:$0xf]
    %v1356 = vld [vmem:[%s7 + $0x230] sm:$0xf]
    %v1357 = vld [vmem:[%s7 + $0x234] sm:$0xf]
    %v1358 = vld [vmem:[%s7 + $0x238] sm:$0xf]
    %v1359 = vld [vmem:[%s7 + $0x23c] sm:$0xf]
    %v1360 = vld [vmem:[%s7 + $0x240] sm:$0xf]
    %v1361 = vld [vmem:[%s7 + $0x244] sm:$0xf]
    %v1362 = vld [vmem:[%s7 + $0x248] sm:$0xf]
    %v1363 = vld [vmem:[%s7 + $0x24c] sm:$0xf]
    %v1364 = vld [vmem:[%s7 + $0x250] sm:$0xf]
    %v1365 = vld [vmem:[%s7 + $0x254] sm:$0xf]
    %v1366 = vld [vmem:[%s7 + $0x258] sm:$0xf]
    %v1367 = vld [vmem:[%s7 + $0x25c] sm:$0xf]
    %v1368 = vld [vmem:[%s7 + $0x260] sm:$0xf]
    %v1369 = vld [vmem:[%s7 + $0x264] sm:$0xf]
    %v1370 = vld [vmem:[%s7 + $0x268] sm:$0xf]
    %v1371 = vld [vmem:[%s7 + $0x26c] sm:$0xf]
    %v1372 = vld [vmem:[%s7 + $0x270] sm:$0xf]
    %v1373 = vld [vmem:[%s7 + $0x274] sm:$0xf]
    %v1374 = vld [vmem:[%s7 + $0x278] sm:$0xf]
    %v1375 = vld [vmem:[%s7 + $0x27c] sm:$0xf]
    %v1376 = vld [vmem:[%s7 + $0x280] sm:$0xf]
    %v1377 = vld [vmem:[%s7 + $0x284] sm:$0xf]
    %v1378 = vld [vmem:[%s7 + $0x288] sm:$0xf]
    %v1379 = vld [vmem:[%s7 + $0x28c] sm:$0xf]
    %v1380 = vld [vmem:[%s7 + $0x290] sm:$0xf]
    %v1381 = vld [vmem:[%s7 + $0x294] sm:$0xf]
    %v1382 = vld [vmem:[%s7 + $0x298] sm:$0xf]
    %v1383 = vld [vmem:[%s7 + $0x29c] sm:$0xf]
    %v1384 = vld [vmem:[%s7 + $0x2a0] sm:$0xf]
    %v1385 = vld [vmem:[%s7 + $0x2a4] sm:$0xf]
    %v1386 = vld [vmem:[%s7 + $0x2a8] sm:$0xf]
    %v1387 = vld [vmem:[%s7 + $0x2ac] sm:$0xf]
    %v1388 = vld [vmem:[%s7 + $0x2b0] sm:$0xf]
    %v1389 = vld [vmem:[%s7 + $0x2b4] sm:$0xf]
    %v1390 = vld [vmem:[%s7 + $0x2b8] sm:$0xf]
    %v1391 = vld [vmem:[%s7 + $0x2bc] sm:$0xf]
    %v1400 = vunpack.c.l.b16 %v1216
    %v1401 = vunpack.c.l.b16 %v1217
    %v1402 = vunpack.c.l.b16 %v1218
    %v1403 = vunpack.c.l.b16 %v1219
    %v1404 = vunpack.c.l.b16 %v1220
    %v1405 = vunpack.c.l.b16 %v1221
    %v1406 = vunpack.c.l.b16 %v1222
    %v1407 = vunpack.c.l.b16 %v1223
    %v1408 = vpack.c.b16 %v1401, %v1400
    %v1409 = vpack.c.b16 %v1403, %v1402
    %v1410 = vpack.c.b16 %v1405, %v1404
    %v1411 = vpack.c.b16 %v1407, %v1406
    %v1417 = vsel %vm418, %v1194, 0
    %1419 = vmatprep.subr.bf16.mxu0 0
    %1420 = vmatpush1.bf16.msra.mxu0 %v1408
    %1421 = vmatprep.subr.bf16.mxu0 0
    %1422 = vmatpush1.bf16.msra.mxu0 %v1409
    %1423 = vmatprep.subr.bf16.mxu0 0
    %1424 = vmatpush1.bf16.msra.mxu0 %v1410
    %1425 = vmatprep.subr.bf16.mxu0 0
    %1426 = vmatpush1.bf16.msra.mxu0 %v1411
    %1427 = vmatprep.subr.bf16.mxu0 0
    %1428 = vmatpush1.bf16.msra.mxu0 0
    %1429 = vmatprep.subr.bf16.mxu0 0
    %1430 = vmatpush1.bf16.msra.mxu0 0
    %1431 = vmatprep.subr.bf16.mxu0 0
    %1432 = vmatpush1.bf16.msra.mxu0 0
    %1433 = vmatprep.subr.bf16.mxu0 0
    %1434 = vmatpush1.bf16.msra.mxu0 0
    %1435 = vmatprep.subr.bf16.mxu0 0
    %1436 = vmatpush1.bf16.msra.mxu0 0
    %1437 = vmatprep.subr.bf16.mxu0 0
    %1438 = vmatpush1.bf16.msra.mxu0 0
    %1439 = vmatprep.subr.bf16.mxu0 0
    %1440 = vmatpush1.bf16.msra.mxu0 0
    %1441 = vmatprep.subr.bf16.mxu0 0
    %1442 = vmatpush1.bf16.msra.mxu0 0
    %1443 = vmatprep.subr.bf16.mxu0 0
    %1444 = vmatpush1.bf16.msra.mxu0 0
    %1445 = vmatprep.subr.bf16.mxu0 0
    %1446 = vmatpush1.bf16.msra.mxu0 0
    %1447 = vmatprep.subr.bf16.mxu0 0
    %1448 = vmatpush1.bf16.msra.mxu0 0
    %1449 = vmatprep.subr.bf16.mxu0 0
    %1450 = vmatpush1.bf16.msra.mxu0 0
    %1451 = vmatprep.mubr.bf16.mxu0 0
    %1452 = vmatmul.mubr.bf16.gmra.mrb[0].mxu0 %v1417
    %v1453 = vpop.f32.mrb[0].mxu0
    %v1454 = vadd.f32 0.0, %v1453
    %v1455 = vpop.f32.mrb[0].mxu0
    %v1456 = vpop.f32.mrb[0].mxu0
    %v1457 = vpop.f32.mrb[0].mxu0
    %1458 = vdwg.mxu0
    %v1467 = vunpack.c.l.b16 %v1224
    %v1468 = vunpack.c.l.b16 %v1225
    %v1469 = vunpack.c.l.b16 %v1226
    %v1470 = vunpack.c.l.b16 %v1227
    %v1471 = vunpack.c.l.b16 %v1228
    %v1472 = vunpack.c.l.b16 %v1229
    %v1473 = vunpack.c.l.b16 %v1230
    %v1474 = vunpack.c.l.b16 %v1231
    %v1475 = vpack.c.b16 %v1468, %v1467
    %v1476 = vpack.c.b16 %v1470, %v1469
    %v1477 = vpack.c.b16 %v1472, %v1471
    %v1478 = vpack.c.b16 %v1474, %v1473
    %v1484 = vsel %vm418, %v1195, 0
    %1486 = vmatprep.subr.bf16.mxu0 0
    %1487 = vmatpush1.bf16.msra.mxu0 %v1475
    %1488 = vmatprep.subr.bf16.mxu0 0
    %1489 = vmatpush1.bf16.msra.mxu0 %v1476
    %1490 = vmatprep.subr.bf16.mxu0 0
    %1491 = vmatpush1.bf16.msra.mxu0 %v1477
    %1492 = vmatprep.subr.bf16.mxu0 0
    %1493 = vmatpush1.bf16.msra.mxu0 %v1478
    %1494 = vmatprep.subr.bf16.mxu0 0
    %1495 = vmatpush1.bf16.msra.mxu0 0
    %1496 = vmatprep.subr.bf16.mxu0 0
    %1497 = vmatpush1.bf16.msra.mxu0 0
    %1498 = vmatprep.subr.bf16.mxu0 0
    %1499 = vmatpush1.bf16.msra.mxu0 0
    %1500 = vmatprep.subr.bf16.mxu0 0
    %1501 = vmatpush1.bf16.msra.mxu0 0
    %1502 = vmatprep.subr.bf16.mxu0 0
    %1503 = vmatpush1.bf16.msra.mxu0 0
    %1504 = vmatprep.subr.bf16.mxu0 0
    %1505 = vmatpush1.bf16.msra.mxu0 0
    %1506 = vmatprep.subr.bf16.mxu0 0
    %1507 = vmatpush1.bf16.msra.mxu0 0
    %1508 = vmatprep.subr.bf16.mxu0 0
    %1509 = vmatpush1.bf16.msra.mxu0 0
    %1510 = vmatprep.subr.bf16.mxu0 0
    %1511 = vmatpush1.bf16.msra.mxu0 0
    %1512 = vmatprep.subr.bf16.mxu0 0
    %1513 = vmatpush1.bf16.msra.mxu0 0
    %1514 = vmatprep.subr.bf16.mxu0 0
    %1515 = vmatpush1.bf16.msra.mxu0 0
    %1516 = vmatprep.subr.bf16.mxu0 0
    %1517 = vmatpush1.bf16.msra.mxu0 0
    %1518 = vmatprep.mubr.bf16.mxu0 0
    %1519 = vmatmul.mubr.bf16.gmra.mrb[0].mxu0 %v1484
    %v1520 = vpop.f32.mrb[0].mxu0
    %v1521 = vadd.f32 0.0, %v1520
    %v1522 = vpop.f32.mrb[0].mxu0
    %v1523 = vpop.f32.mrb[0].mxu0
    %v1524 = vpop.f32.mrb[0].mxu0
    %1525 = vdwg.mxu0
    %v1534 = vunpack.c.l.b16 %v1232
    %v1535 = vunpack.c.l.b16 %v1233
    %v1536 = vunpack.c.l.b16 %v1234
    %v1537 = vunpack.c.l.b16 %v1235
    %v1538 = vunpack.c.l.b16 %v1236
    %v1539 = vunpack.c.l.b16 %v1237
    %v1540 = vunpack.c.l.b16 %v1238
    %v1541 = vunpack.c.l.b16 %v1239
    %v1542 = vpack.c.b16 %v1535, %v1534
    %v1543 = vpack.c.b16 %v1537, %v1536
    %v1544 = vpack.c.b16 %v1539, %v1538
    %v1545 = vpack.c.b16 %v1541, %v1540
    %v1551 = vsel %vm418, %v1196, 0
    %1553 = vmatprep.subr.bf16.mxu0 0
    %1554 = vmatpush1.bf16.msra.mxu0 %v1542
    %1555 = vmatprep.subr.bf16.mxu0 0
    %1556 = vmatpush1.bf16.msra.mxu0 %v1543
    %1557 = vmatprep.subr.bf16.mxu0 0
    %1558 = vmatpush1.bf16.msra.mxu0 %v1544
    %1559 = vmatprep.subr.bf16.mxu0 0
    %1560 = vmatpush1.bf16.msra.mxu0 %v1545
    %1561 = vmatprep.subr.bf16.mxu0 0
    %1562 = vmatpush1.bf16.msra.mxu0 0
    %1563 = vmatprep.subr.bf16.mxu0 0
    %1564 = vmatpush1.bf16.msra.mxu0 0
    %1565 = vmatprep.subr.bf16.mxu0 0
    %1566 = vmatpush1.bf16.msra.mxu0 0
    %1567 = vmatprep.subr.bf16.mxu0 0
    %1568 = vmatpush1.bf16.msra.mxu0 0
    %1569 = vmatprep.subr.bf16.mxu0 0
    %1570 = vmatpush1.bf16.msra.mxu0 0
    %1571 = vmatprep.subr.bf16.mxu0 0
    %1572 = vmatpush1.bf16.msra.mxu0 0
    %1573 = vmatprep.subr.bf16.mxu0 0
    %1574 = vmatpush1.bf16.msra.mxu0 0
    %1575 = vmatprep.subr.bf16.mxu0 0
    %1576 = vmatpush1.bf16.msra.mxu0 0
    %1577 = vmatprep.subr.bf16.mxu0 0
    %1578 = vmatpush1.bf16.msra.mxu0 0
    %1579 = vmatprep.subr.bf16.mxu0 0
    %1580 = vmatpush1.bf16.msra.mxu0 0
    %1581 = vmatprep.subr.bf16.mxu0 0
    %1582 = vmatpush1.bf16.msra.mxu0 0
    %1583 = vmatprep.subr.bf16.mxu0 0
    %1584 = vmatpush1.bf16.msra.mxu0 0
    %1585 = vmatprep.mubr.bf16.mxu0 0
    %1586 = vmatmul.mubr.bf16.gmra.mrb[0].mxu0 %v1551
    %v1587 = vpop.f32.mrb[0].mxu0
    %v1588 = vadd.f32 0.0, %v1587
    %v1589 = vpop.f32.mrb[0].mxu0
    %v1590 = vpop.f32.mrb[0].mxu0
    %v1591 = vpop.f32.mrb[0].mxu0
    %1592 = vdwg.mxu0
    %v1601 = vunpack.c.l.b16 %v1240
    %v1602 = vunpack.c.l.b16 %v1241
    %v1603 = vunpack.c.l.b16 %v1242
    %v1604 = vunpack.c.l.b16 %v1243
    %v1605 = vunpack.c.l.b16 %v1244
    %v1606 = vunpack.c.l.b16 %v1245
    %v1607 = vunpack.c.l.b16 %v1246
    %v1608 = vunpack.c.l.b16 %v1247
    %v1609 = vpack.c.b16 %v1602, %v1601
    %v1610 = vpack.c.b16 %v1604, %v1603
    %v1611 = vpack.c.b16 %v1606, %v1605
    %v1612 = vpack.c.b16 %v1608, %v1607
    %v1618 = vsel %vm418, %v1197, 0
    %1620 = vmatprep.subr.bf16.mxu0 0
    %1621 = vmatpush1.bf16.msra.mxu0 %v1609
    %1622 = vmatprep.subr.bf16.mxu0 0
    %1623 = vmatpush1.bf16.msra.mxu0 %v1610
    %1624 = vmatprep.subr.bf16.mxu0 0
    %1625 = vmatpush1.bf16.msra.mxu0 %v1611
    %1626 = vmatprep.subr.bf16.mxu0 0
    %1627 = vmatpush1.bf16.msra.mxu0 %v1612
    %1628 = vmatprep.subr.bf16.mxu0 0
    %1629 = vmatpush1.bf16.msra.mxu0 0
    %1630 = vmatprep.subr.bf16.mxu0 0
    %1631 = vmatpush1.bf16.msra.mxu0 0
    %1632 = vmatprep.subr.bf16.mxu0 0
    %1633 = vmatpush1.bf16.msra.mxu0 0
    %1634 = vmatprep.subr.bf16.mxu0 0
    %1635 = vmatpush1.bf16.msra.mxu0 0
    %1636 = vmatprep.subr.bf16.mxu0 0
    %1637 = vmatpush1.bf16.msra.mxu0 0
    %1638 = vmatprep.subr.bf16.mxu0 0
    %1639 = vmatpush1.bf16.msra.mxu0 0
    %1640 = vmatprep.subr.bf16.mxu0 0
    %1641 = vmatpush1.bf16.msra.mxu0 0
    %1642 = vmatprep.subr.bf16.mxu0 0
    %1643 = vmatpush1.bf16.msra.mxu0 0
    %1644 = vmatprep.subr.bf16.mxu0 0
    %1645 = vmatpush1.bf16.msra.mxu0 0
    %1646 = vmatprep.subr.bf16.mxu0 0
    %1647 = vmatpush1.bf16.msra.mxu0 0
    %1648 = vmatprep.subr.bf16.mxu0 0
    %1649 = vmatpush1.bf16.msra.mxu0 0
    %1650 = vmatprep.subr.bf16.mxu0 0
    %1651 = vmatpush1.bf16.msra.mxu0 0
    %1652 = vmatprep.mubr.bf16.mxu0 0
    %1653 = vmatmul.mubr.bf16.gmra.mrb[0].mxu0 %v1618
    %v1654 = vpop.f32.mrb[0].mxu0
    %v1655 = vadd.f32 0.0, %v1654
    %v1656 = vpop.f32.mrb[0].mxu0
    %v1657 = vpop.f32.mrb[0].mxu0
    %v1658 = vpop.f32.mrb[0].mxu0
    %1659 = vdwg.mxu0
    %v1668 = vunpack.c.l.b16 %v1248
    %v1669 = vunpack.c.l.b16 %v1249
    %v1670 = vunpack.c.l.b16 %v1250
    %v1671 = vunpack.c.l.b16 %v1251
    %v1672 = vunpack.c.l.b16 %v1252
    %v1673 = vunpack.c.l.b16 %v1253
    %v1674 = vunpack.c.l.b16 %v1254
    %v1675 = vunpack.c.l.b16 %v1255
    %v1676 = vpack.c.b16 %v1669, %v1668
    %v1677 = vpack.c.b16 %v1671, %v1670
    %v1678 = vpack.c.b16 %v1673, %v1672
    %v1679 = vpack.c.b16 %v1675, %v1674
    %v1685 = vsel %vm418, %v1198, 0
    %1687 = vmatprep.subr.bf16.mxu0 0
    %1688 = vmatpush1.bf16.msra.mxu0 %v1676
    %1689 = vmatprep.subr.bf16.mxu0 0
    %1690 = vmatpush1.bf16.msra.mxu0 %v1677
    %1691 = vmatprep.subr.bf16.mxu0 0
    %1692 = vmatpush1.bf16.msra.mxu0 %v1678
    %1693 = vmatprep.subr.bf16.mxu0 0
    %1694 = vmatpush1.bf16.msra.mxu0 %v1679
    %1695 = vmatprep.subr.bf16.mxu0 0
    %1696 = vmatpush1.bf16.msra.mxu0 0
    %1697 = vmatprep.subr.bf16.mxu0 0
    %1698 = vmatpush1.bf16.msra.mxu0 0
    %1699 = vmatprep.subr.bf16.mxu0 0
    %1700 = vmatpush1.bf16.msra.mxu0 0
    %1701 = vmatprep.subr.bf16.mxu0 0
    %1702 = vmatpush1.bf16.msra.mxu0 0
    %1703 = vmatprep.subr.bf16.mxu0 0
    %1704 = vmatpush1.bf16.msra.mxu0 0
    %1705 = vmatprep.subr.bf16.mxu0 0
    %1706 = vmatpush1.bf16.msra.mxu0 0
    %1707 = vmatprep.subr.bf16.mxu0 0
    %1708 = vmatpush1.bf16.msra.mxu0 0
    %1709 = vmatprep.subr.bf16.mxu0 0
    %1710 = vmatpush1.bf16.msra.mxu0 0
    %1711 = vmatprep.subr.bf16.mxu0 0
    %1712 = vmatpush1.bf16.msra.mxu0 0
    %1713 = vmatprep.subr.bf16.mxu0 0
    %1714 = vmatpush1.bf16.msra.mxu0 0
    %1715 = vmatprep.subr.bf16.mxu0 0
    %1716 = vmatpush1.bf16.msra.mxu0 0
    %1717 = vmatprep.subr.bf16.mxu0 0
    %1718 = vmatpush1.bf16.msra.mxu0 0
    %1719 = vmatprep.mubr.bf16.mxu0 0
    %1720 = vmatmul.mubr.bf16.gmra.mrb[0].mxu0 %v1685
    %v1721 = vpop.f32.mrb[0].mxu0
    %v1722 = vadd.f32 0.0, %v1721
    %v1723 = vpop.f32.mrb[0].mxu0
    %v1724 = vpop.f32.mrb[0].mxu0
    %v1725 = vpop.f32.mrb[0].mxu0
    %1726 = vdwg.mxu0
    %v1735 = vunpack.c.l.b16 %v1256
    %v1736 = vunpack.c.l.b16 %v1257
    %v1737 = vunpack.c.l.b16 %v1258
    %v1738 = vunpack.c.l.b16 %v1259
    %v1739 = vunpack.c.l.b16 %v1260
    %v1740 = vunpack.c.l.b16 %v1261
    %v1741 = vunpack.c.l.b16 %v1262
    %v1742 = vunpack.c.l.b16 %v1263
    %v1743 = vpack.c.b16 %v1736, %v1735
    %v1744 = vpack.c.b16 %v1738, %v1737
    %v1745 = vpack.c.b16 %v1740, %v1739
    %v1746 = vpack.c.b16 %v1742, %v1741
    %v1752 = vsel %vm418, %v1199, 0
    %1754 = vmatprep.subr.bf16.mxu0 0
    %1755 = vmatpush1.bf16.msra.mxu0 %v1743
    %1756 = vmatprep.subr.bf16.mxu0 0
    %1757 = vmatpush1.bf16.msra.mxu0 %v1744
    %1758 = vmatprep.subr.bf16.mxu0 0
    %1759 = vmatpush1.bf16.msra.mxu0 %v1745
    %1760 = vmatprep.subr.bf16.mxu0 0
    %1761 = vmatpush1.bf16.msra.mxu0 %v1746
    %1762 = vmatprep.subr.bf16.mxu0 0
    %1763 = vmatpush1.bf16.msra.mxu0 0
    %1764 = vmatprep.subr.bf16.mxu0 0
    %1765 = vmatpush1.bf16.msra.mxu0 0
    %1766 = vmatprep.subr.bf16.mxu0 0
    %1767 = vmatpush1.bf16.msra.mxu0 0
    %1768 = vmatprep.subr.bf16.mxu0 0
    %1769 = vmatpush1.bf16.msra.mxu0 0
    %1770 = vmatprep.subr.bf16.mxu0 0
    %1771 = vmatpush1.bf16.msra.mxu0 0
    %1772 = vmatprep.subr.bf16.mxu0 0
    %1773 = vmatpush1.bf16.msra.mxu0 0
    %1774 = vmatprep.subr.bf16.mxu0 0
    %1775 = vmatpush1.bf16.msra.mxu0 0
    %1776 = vmatprep.subr.bf16.mxu0 0
    %1777 = vmatpush1.bf16.msra.mxu0 0
    %1778 = vmatprep.subr.bf16.mxu0 0
    %1779 = vmatpush1.bf16.msra.mxu0 0
    %1780 = vmatprep.subr.bf16.mxu0 0
    %1781 = vmatpush1.bf16.msra.mxu0 0
    %1782 = vmatprep.subr.bf16.mxu0 0
    %1783 = vmatpush1.bf16.msra.mxu0 0
    %1784 = vmatprep.subr.bf16.mxu0 0
    %1785 = vmatpush1.bf16.msra.mxu0 0
    %1786 = vmatprep.mubr.bf16.mxu0 0
    %1787 = vmatmul.mubr.bf16.gmra.mrb[0].mxu0 %v1752
    %v1788 = vpop.f32.mrb[0].mxu0
    %v1789 = vadd.f32 0.0, %v1788
    %v1790 = vpop.f32.mrb[0].mxu0
    %v1791 = vpop.f32.mrb[0].mxu0
    %v1792 = vpop.f32.mrb[0].mxu0
    %1793 = vdwg.mxu0
    %v1802 = vunpack.c.l.b16 %v1264
    %v1803 = vunpack.c.l.b16 %v1265
    %v1804 = vunpack.c.l.b16 %v1266
    %v1805 = vunpack.c.l.b16 %v1267
    %v1806 = vunpack.c.l.b16 %v1268
    %v1807 = vunpack.c.l.b16 %v1269
    %v1808 = vunpack.c.l.b16 %v1270
    %v1809 = vunpack.c.l.b16 %v1271
    %v1810 = vpack.c.b16 %v1803, %v1802
    %v1811 = vpack.c.b16 %v1805, %v1804
    %v1812 = vpack.c.b16 %v1807, %v1806
    %v1813 = vpack.c.b16 %v1809, %v1808
    %v1819 = vsel %vm418, %v1200, 0
    %1821 = vmatprep.subr.bf16.mxu0 0
    %1822 = vmatpush1.bf16.msra.mxu0 %v1810
    %1823 = vmatprep.subr.bf16.mxu0 0
    %1824 = vmatpush1.bf16.msra.mxu0 %v1811
    %1825 = vmatprep.subr.bf16.mxu0 0
    %1826 = vmatpush1.bf16.msra.mxu0 %v1812
    %1827 = vmatprep.subr.bf16.mxu0 0
    %1828 = vmatpush1.bf16.msra.mxu0 %v1813
    %1829 = vmatprep.subr.bf16.mxu0 0
    %1830 = vmatpush1.bf16.msra.mxu0 0
    %1831 = vmatprep.subr.bf16.mxu0 0
    %1832 = vmatpush1.bf16.msra.mxu0 0
    %1833 = vmatprep.subr.bf16.mxu0 0
    %1834 = vmatpush1.bf16.msra.mxu0 0
    %1835 = vmatprep.subr.bf16.mxu0 0
    %1836 = vmatpush1.bf16.msra.mxu0 0
    %1837 = vmatprep.subr.bf16.mxu0 0
    %1838 = vmatpush1.bf16.msra.mxu0 0
    %1839 = vmatprep.subr.bf16.mxu0 0
    %1840 = vmatpush1.bf16.msra.mxu0 0
    %1841 = vmatprep.subr.bf16.mxu0 0
    %1842 = vmatpush1.bf16.msra.mxu0 0
    %1843 = vmatprep.subr.bf16.mxu0 0
    %1844 = vmatpush1.bf16.msra.mxu0 0
    %1845 = vmatprep.subr.bf16.mxu0 0
    %1846 = vmatpush1.bf16.msra.mxu0 0
    %1847 = vmatprep.subr.bf16.mxu0 0
    %1848 = vmatpush1.bf16.msra.mxu0 0
    %1849 = vmatprep.subr.bf16.mxu0 0
    %1850 = vmatpush1.bf16.msra.mxu0 0
    %1851 = vmatprep.subr.bf16.mxu0 0
    %1852 = vmatpush1.bf16.msra.mxu0 0
    %1853 = vmatprep.mubr.bf16.mxu0 0
    %1854 = vmatmul.mubr.bf16.gmra.mrb[0].mxu0 %v1819
    %v1855 = vpop.f32.mrb[0].mxu0
    %v1856 = vadd.f32 0.0, %v1855
    %v1857 = vpop.f32.mrb[0].mxu0
    %v1858 = vpop.f32.mrb[0].mxu0
    %v1859 = vpop.f32.mrb[0].mxu0
    %1860 = vdwg.mxu0
    %v1869 = vunpack.c.l.b16 %v1272
    %v1870 = vunpack.c.l.b16 %v1273
    %v1871 = vunpack.c.l.b16 %v1274
    %v1872 = vunpack.c.l.b16 %v1275
    %v1873 = vunpack.c.l.b16 %v1276
    %v1874 = vunpack.c.l.b16 %v1277
    %v1875 = vunpack.c.l.b16 %v1278
    %v1876 = vunpack.c.l.b16 %v1279
    %v1877 = vpack.c.b16 %v1870, %v1869
    %v1878 = vpack.c.b16 %v1872, %v1871
    %v1879 = vpack.c.b16 %v1874, %v1873
    %v1880 = vpack.c.b16 %v1876, %v1875
    %v1886 = vsel %vm418, %v1201, 0
    %1888 = vmatprep.subr.bf16.mxu0 0
    %1889 = vmatpush1.bf16.msra.mxu0 %v1877
    %1890 = vmatprep.subr.bf16.mxu0 0
    %1891 = vmatpush1.bf16.msra.mxu0 %v1878
    %1892 = vmatprep.subr.bf16.mxu0 0
    %1893 = vmatpush1.bf16.msra.mxu0 %v1879
    %1894 = vmatprep.subr.bf16.mxu0 0
    %1895 = vmatpush1.bf16.msra.mxu0 %v1880
    %1896 = vmatprep.subr.bf16.mxu0 0
    %1897 = vmatpush1.bf16.msra.mxu0 0
    %1898 = vmatprep.subr.bf16.mxu0 0
    %1899 = vmatpush1.bf16.msra.mxu0 0
    %1900 = vmatprep.subr.bf16.mxu0 0
    %1901 = vmatpush1.bf16.msra.mxu0 0
    %1902 = vmatprep.subr.bf16.mxu0 0
    %1903 = vmatpush1.bf16.msra.mxu0 0
    %1904 = vmatprep.subr.bf16.mxu0 0
    %1905 = vmatpush1.bf16.msra.mxu0 0
    %1906 = vmatprep.subr.bf16.mxu0 0
    %1907 = vmatpush1.bf16.msra.mxu0 0
    %1908 = vmatprep.subr.bf16.mxu0 0
    %1909 = vmatpush1.bf16.msra.mxu0 0
    %1910 = vmatprep.subr.bf16.mxu0 0
    %1911 = vmatpush1.bf16.msra.mxu0 0
    %1912 = vmatprep.subr.bf16.mxu0 0
    %1913 = vmatpush1.bf16.msra.mxu0 0
    %1914 = vmatprep.subr.bf16.mxu0 0
    %1915 = vmatpush1.bf16.msra.mxu0 0
    %1916 = vmatprep.subr.bf16.mxu0 0
    %1917 = vmatpush1.bf16.msra.mxu0 0
    %1918 = vmatprep.subr.bf16.mxu0 0
    %1919 = vmatpush1.bf16.msra.mxu0 0
    %1920 = vmatprep.mubr.bf16.mxu0 0
    %1921 = vmatmul.mubr.bf16.gmra.mrb[0].mxu0 %v1886
    %v1922 = vpop.f32.mrb[0].mxu0
    %v1923 = vadd.f32 0.0, %v1922
    %v1924 = vpop.f32.mrb[0].mxu0
    %v1925 = vpop.f32.mrb[0].mxu0
    %v1926 = vpop.f32.mrb[0].mxu0
    %1927 = vdwg.mxu0
    %v1936 = vunpack.c.l.b16 %v1280
    %v1937 = vunpack.c.l.b16 %v1281
    %v1938 = vunpack.c.l.b16 %v1282
    %v1939 = vunpack.c.l.b16 %v1283
    %v1940 = vunpack.c.l.b16 %v1284
    %v1941 = vunpack.c.l.b16 %v1285
    %v1942 = vunpack.c.l.b16 %v1286
    %v1943 = vunpack.c.l.b16 %v1287
    %v1944 = vpack.c.b16 %v1937, %v1936
    %v1945 = vpack.c.b16 %v1939, %v1938
    %v1946 = vpack.c.b16 %v1941, %v1940
    %v1947 = vpack.c.b16 %v1943, %v1942
    %v1953 = vsel %vm418, %v1202, 0
    %1955 = vmatprep.subr.bf16.mxu0 0
    %1956 = vmatpush1.bf16.msra.mxu0 %v1944
    %1957 = vmatprep.subr.bf16.mxu0 0
    %1958 = vmatpush1.bf16.msra.mxu0 %v1945
    %1959 = vmatprep.subr.bf16.mxu0 0
    %1960 = vmatpush1.bf16.msra.mxu0 %v1946
    %1961 = vmatprep.subr.bf16.mxu0 0
    %1962 = vmatpush1.bf16.msra.mxu0 %v1947
    %1963 = vmatprep.subr.bf16.mxu0 0
    %1964 = vmatpush1.bf16.msra.mxu0 0
    %1965 = vmatprep.subr.bf16.mxu0 0
    %1966 = vmatpush1.bf16.msra.mxu0 0
    %1967 = vmatprep.subr.bf16.mxu0 0
    %1968 = vmatpush1.bf16.msra.mxu0 0
    %1969 = vmatprep.subr.bf16.mxu0 0
    %1970 = vmatpush1.bf16.msra.mxu0 0
    %1971 = vmatprep.subr.bf16.mxu0 0
    %1972 = vmatpush1.bf16.msra.mxu0 0
    %1973 = vmatprep.subr.bf16.mxu0 0
    %1974 = vmatpush1.bf16.msra.mxu0 0
    %1975 = vmatprep.subr.bf16.mxu0 0
    %1976 = vmatpush1.bf16.msra.mxu0 0
    %1977 = vmatprep.subr.bf16.mxu0 0
    %1978 = vmatpush1.bf16.msra.mxu0 0
    %1979 = vmatprep.subr.bf16.mxu0 0
    %1980 = vmatpush1.bf16.msra.mxu0 0
    %1981 = vmatprep.subr.bf16.mxu0 0
    %1982 = vmatpush1.bf16.msra.mxu0 0
    %1983 = vmatprep.subr.bf16.mxu0 0
    %1984 = vmatpush1.bf16.msra.mxu0 0
    %1985 = vmatprep.subr.bf16.mxu0 0
    %1986 = vmatpush1.bf16.msra.mxu0 0
    %1987 = vmatprep.mubr.bf16.mxu0 0
    %1988 = vmatmul.mubr.bf16.gmra.mrb[0].mxu0 %v1953
    %v1989 = vpop.f32.mrb[0].mxu0
    %v1990 = vadd.f32 0.0, %v1989
    %v1991 = vpop.f32.mrb[0].mxu0
    %v1992 = vpop.f32.mrb[0].mxu0
    %v1993 = vpop.f32.mrb[0].mxu0
    %1994 = vdwg.mxu0
    %v2003 = vunpack.c.l.b16 %v1288
    %v2004 = vunpack.c.l.b16 %v1289
    %v2005 = vunpack.c.l.b16 %v1290
    %v2006 = vunpack.c.l.b16 %v1291
    %v2007 = vunpack.c.l.b16 %v1292
    %v2008 = vunpack.c.l.b16 %v1293
    %v2009 = vunpack.c.l.b16 %v1294
    %v2010 = vunpack.c.l.b16 %v1295
    %v2011 = vpack.c.b16 %v2004, %v2003
    %v2012 = vpack.c.b16 %v2006, %v2005
    %v2013 = vpack.c.b16 %v2008, %v2007
    %v2014 = vpack.c.b16 %v2010, %v2009
    %v2020 = vsel %vm418, %v1203, 0
    %2022 = vmatprep.subr.bf16.mxu0 0
    %2023 = vmatpush1.bf16.msra.mxu0 %v2011
    %2024 = vmatprep.subr.bf16.mxu0 0
    %2025 = vmatpush1.bf16.msra.mxu0 %v2012
    %2026 = vmatprep.subr.bf16.mxu0 0
    %2027 = vmatpush1.bf16.msra.mxu0 %v2013
    %2028 = vmatprep.subr.bf16.mxu0 0
    %2029 = vmatpush1.bf16.msra.mxu0 %v2014
    %2030 = vmatprep.subr.bf16.mxu0 0
    %2031 = vmatpush1.bf16.msra.mxu0 0
    %2032 = vmatprep.subr.bf16.mxu0 0
    %2033 = vmatpush1.bf16.msra.mxu0 0
    %2034 = vmatprep.subr.bf16.mxu0 0
    %2035 = vmatpush1.bf16.msra.mxu0 0
    %2036 = vmatprep.subr.bf16.mxu0 0
    %2037 = vmatpush1.bf16.msra.mxu0 0
    %2038 = vmatprep.subr.bf16.mxu0 0
    %2039 = vmatpush1.bf16.msra.mxu0 0
    %2040 = vmatprep.subr.bf16.mxu0 0
    %2041 = vmatpush1.bf16.msra.mxu0 0
    %2042 = vmatprep.subr.bf16.mxu0 0
    %2043 = vmatpush1.bf16.msra.mxu0 0
    %2044 = vmatprep.subr.bf16.mxu0 0
    %2045 = vmatpush1.bf16.msra.mxu0 0
    %2046 = vmatprep.subr.bf16.mxu0 0
    %2047 = vmatpush1.bf16.msra.mxu0 0
    %2048 = vmatprep.subr.bf16.mxu0 0
    %2049 = vmatpush1.bf16.msra.mxu0 0
    %2050 = vmatprep.subr.bf16.mxu0 0
    %2051 = vmatpush1.bf16.msra.mxu0 0
    %2052 = vmatprep.subr.bf16.mxu0 0
    %2053 = vmatpush1.bf16.msra.mxu0 0
    %2054 = vmatprep.mubr.bf16.mxu0 0
    %2055 = vmatmul.mubr.bf16.gmra.mrb[0].mxu0 %v2020
    %v2056 = vpop.f32.mrb[0].mxu0
    %v2057 = vadd.f32 0.0, %v2056
    %v2058 = vpop.f32.mrb[0].mxu0
    %v2059 = vpop.f32.mrb[0].mxu0
    %v2060 = vpop.f32.mrb[0].mxu0
    %2061 = vdwg.mxu0
    %v2070 = vunpack.c.l.b16 %v1296
    %v2071 = vunpack.c.l.b16 %v1297
    %v2072 = vunpack.c.l.b16 %v1298
    %v2073 = vunpack.c.l.b16 %v1299
    %v2074 = vunpack.c.l.b16 %v1300
    %v2075 = vunpack.c.l.b16 %v1301
    %v2076 = vunpack.c.l.b16 %v1302
    %v2077 = vunpack.c.l.b16 %v1303
    %v2078 = vpack.c.b16 %v2071, %v2070
    %v2079 = vpack.c.b16 %v2073, %v2072
    %v2080 = vpack.c.b16 %v2075, %v2074
    %v2081 = vpack.c.b16 %v2077, %v2076
    %v2087 = vsel %vm418, %v1204, 0
    %2089 = vmatprep.subr.bf16.mxu0 0
    %2090 = vmatpush1.bf16.msra.mxu0 %v2078
    %2091 = vmatprep.subr.bf16.mxu0 0
    %2092 = vmatpush1.bf16.msra.mxu0 %v2079
    %2093 = vmatprep.subr.bf16.mxu0 0
    %2094 = vmatpush1.bf16.msra.mxu0 %v2080
    %2095 = vmatprep.subr.bf16.mxu0 0
    %2096 = vmatpush1.bf16.msra.mxu0 %v2081
    %2097 = vmatprep.subr.bf16.mxu0 0
    %2098 = vmatpush1.bf16.msra.mxu0 0
    %2099 = vmatprep.subr.bf16.mxu0 0
    %2100 = vmatpush1.bf16.msra.mxu0 0
    %2101 = vmatprep.subr.bf16.mxu0 0
    %2102 = vmatpush1.bf16.msra.mxu0 0
    %2103 = vmatprep.subr.bf16.mxu0 0
    %2104 = vmatpush1.bf16.msra.mxu0 0
    %2105 = vmatprep.subr.bf16.mxu0 0
    %2106 = vmatpush1.bf16.msra.mxu0 0
    %2107 = vmatprep.subr.bf16.mxu0 0
    %2108 = vmatpush1.bf16.msra.mxu0 0
    %2109 = vmatprep.subr.bf16.mxu0 0
    %2110 = vmatpush1.bf16.msra.mxu0 0
    %2111 = vmatprep.subr.bf16.mxu0 0
    %2112 = vmatpush1.bf16.msra.mxu0 0
    %2113 = vmatprep.subr.bf16.mxu0 0
    %2114 = vmatpush1.bf16.msra.mxu0 0
    %2115 = vmatprep.subr.bf16.mxu0 0
    %2116 = vmatpush1.bf16.msra.mxu0 0
    %2117 = vmatprep.subr.bf16.mxu0 0
    %2118 = vmatpush1.bf16.msra.mxu0 0
    %2119 = vmatprep.subr.bf16.mxu0 0
    %2120 = vmatpush1.bf16.msra.mxu0 0
    %2121 = vmatprep.mubr.bf16.mxu0 0
    %2122 = vmatmul.mubr.bf16.gmra.mrb[0].mxu0 %v2087
    %v2123 = vpop.f32.mrb[0].mxu0
    %v2124 = vadd.f32 0.0, %v2123
    %v2125 = vpop.f32.mrb[0].mxu0
    %v2126 = vpop.f32.mrb[0].mxu0
    %v2127 = vpop.f32.mrb[0].mxu0
    %2128 = vdwg.mxu0
    %v2137 = vunpack.c.l.b16 %v1304
    %v2138 = vunpack.c.l.b16 %v1305
    %v2139 = vunpack.c.l.b16 %v1306
    %v2140 = vunpack.c.l.b16 %v1307
    %v2141 = vunpack.c.l.b16 %v1308
    %v2142 = vunpack.c.l.b16 %v1309
    %v2143 = vunpack.c.l.b16 %v1310
    %v2144 = vunpack.c.l.b16 %v1311
    %v2145 = vpack.c.b16 %v2138, %v2137
    %v2146 = vpack.c.b16 %v2140, %v2139
    %v2147 = vpack.c.b16 %v2142, %v2141
    %v2148 = vpack.c.b16 %v2144, %v2143
    %v2154 = vsel %vm418, %v1205, 0
    %2156 = vmatprep.subr.bf16.mxu0 0
    %2157 = vmatpush1.bf16.msra.mxu0 %v2145
    %2158 = vmatprep.subr.bf16.mxu0 0
    %2159 = vmatpush1.bf16.msra.mxu0 %v2146
    %2160 = vmatprep.subr.bf16.mxu0 0
    %2161 = vmatpush1.bf16.msra.mxu0 %v2147
    %2162 = vmatprep.subr.bf16.mxu0 0
    %2163 = vmatpush1.bf16.msra.mxu0 %v2148
    %2164 = vmatprep.subr.bf16.mxu0 0
    %2165 = vmatpush1.bf16.msra.mxu0 0
    %2166 = vmatprep.subr.bf16.mxu0 0
    %2167 = vmatpush1.bf16.msra.mxu0 0
    %2168 = vmatprep.subr.bf16.mxu0 0
    %2169 = vmatpush1.bf16.msra.mxu0 0
    %2170 = vmatprep.subr.bf16.mxu0 0
    %2171 = vmatpush1.bf16.msra.mxu0 0
    %2172 = vmatprep.subr.bf16.mxu0 0
    %2173 = vmatpush1.bf16.msra.mxu0 0
    %2174 = vmatprep.subr.bf16.mxu0 0
    %2175 = vmatpush1.bf16.msra.mxu0 0
    %2176 = vmatprep.subr.bf16.mxu0 0
    %2177 = vmatpush1.bf16.msra.mxu0 0
    %2178 = vmatprep.subr.bf16.mxu0 0
    %2179 = vmatpush1.bf16.msra.mxu0 0
    %2180 = vmatprep.subr.bf16.mxu0 0
    %2181 = vmatpush1.bf16.msra.mxu0 0
    %2182 = vmatprep.subr.bf16.mxu0 0
    %2183 = vmatpush1.bf16.msra.mxu0 0
    %2184 = vmatprep.subr.bf16.mxu0 0
    %2185 = vmatpush1.bf16.msra.mxu0 0
    %2186 = vmatprep.subr.bf16.mxu0 0
    %2187 = vmatpush1.bf16.msra.mxu0 0
    %2188 = vmatprep.mubr.bf16.mxu0 0
    %2189 = vmatmul.mubr.bf16.gmra.mrb[0].mxu0 %v2154
    %v2190 = vpop.f32.mrb[0].mxu0
    %v2191 = vadd.f32 0.0, %v2190
    %v2192 = vpop.f32.mrb[0].mxu0
    %v2193 = vpop.f32.mrb[0].mxu0
    %v2194 = vpop.f32.mrb[0].mxu0
    %2195 = vdwg.mxu0
    %v2204 = vunpack.c.l.b16 %v1312
    %v2205 = vunpack.c.l.b16 %v1313
    %v2206 = vunpack.c.l.b16 %v1314
    %v2207 = vunpack.c.l.b16 %v1315
    %v2208 = vunpack.c.l.b16 %v1316
    %v2209 = vunpack.c.l.b16 %v1317
    %v2210 = vunpack.c.l.b16 %v1318
    %v2211 = vunpack.c.l.b16 %v1319
    %v2212 = vpack.c.b16 %v2205, %v2204
    %v2213 = vpack.c.b16 %v2207, %v2206
    %v2214 = vpack.c.b16 %v2209, %v2208
    %v2215 = vpack.c.b16 %v2211, %v2210
    %v2221 = vsel %vm418, %v1206, 0
    %2223 = vmatprep.subr.bf16.mxu0 0
    %2224 = vmatpush1.bf16.msra.mxu0 %v2212
    %2225 = vmatprep.subr.bf16.mxu0 0
    %2226 = vmatpush1.bf16.msra.mxu0 %v2213
    %2227 = vmatprep.subr.bf16.mxu0 0
    %2228 = vmatpush1.bf16.msra.mxu0 %v2214
    %2229 = vmatprep.subr.bf16.mxu0 0
    %2230 = vmatpush1.bf16.msra.mxu0 %v2215
    %2231 = vmatprep.subr.bf16.mxu0 0
    %2232 = vmatpush1.bf16.msra.mxu0 0
    %2233 = vmatprep.subr.bf16.mxu0 0
    %2234 = vmatpush1.bf16.msra.mxu0 0
    %2235 = vmatprep.subr.bf16.mxu0 0
    %2236 = vmatpush1.bf16.msra.mxu0 0
    %2237 = vmatprep.subr.bf16.mxu0 0
    %2238 = vmatpush1.bf16.msra.mxu0 0
    %2239 = vmatprep.subr.bf16.mxu0 0
    %2240 = vmatpush1.bf16.msra.mxu0 0
    %2241 = vmatprep.subr.bf16.mxu0 0
    %2242 = vmatpush1.bf16.msra.mxu0 0
    %2243 = vmatprep.subr.bf16.mxu0 0
    %2244 = vmatpush1.bf16.msra.mxu0 0
    %2245 = vmatprep.subr.bf16.mxu0 0
    %2246 = vmatpush1.bf16.msra.mxu0 0
    %2247 = vmatprep.subr.bf16.mxu0 0
    %2248 = vmatpush1.bf16.msra.mxu0 0
    %2249 = vmatprep.subr.bf16.mxu0 0
    %2250 = vmatpush1.bf16.msra.mxu0 0
    %2251 = vmatprep.subr.bf16.mxu0 0
    %2252 = vmatpush1.bf16.msra.mxu0 0
    %2253 = vmatprep.subr.bf16.mxu0 0
    %2254 = vmatpush1.bf16.msra.mxu0 0
    %2255 = vmatprep.mubr.bf16.mxu0 0
    %2256 = vmatmul.mubr.bf16.gmra.mrb[0].mxu0 %v2221
    %v2257 = vpop.f32.mrb[0].mxu0
    %v2258 = vadd.f32 0.0, %v2257
    %v2259 = vpop.f32.mrb[0].mxu0
    %v2260 = vpop.f32.mrb[0].mxu0
    %v2261 = vpop.f32.mrb[0].mxu0
    %2262 = vdwg.mxu0
    %v2271 = vunpack.c.l.b16 %v1320
    %v2272 = vunpack.c.l.b16 %v1321
    %v2273 = vunpack.c.l.b16 %v1322
    %v2274 = vunpack.c.l.b16 %v1323
    %v2275 = vunpack.c.l.b16 %v1324
    %v2276 = vunpack.c.l.b16 %v1325
    %v2277 = vunpack.c.l.b16 %v1326
    %v2278 = vunpack.c.l.b16 %v1327
    %v2279 = vpack.c.b16 %v2272, %v2271
    %v2280 = vpack.c.b16 %v2274, %v2273
    %v2281 = vpack.c.b16 %v2276, %v2275
    %v2282 = vpack.c.b16 %v2278, %v2277
    %v2288 = vsel %vm418, %v1207, 0
    %2290 = vmatprep.subr.bf16.mxu0 0
    %2291 = vmatpush1.bf16.msra.mxu0 %v2279
    %2292 = vmatprep.subr.bf16.mxu0 0
    %2293 = vmatpush1.bf16.msra.mxu0 %v2280
    %2294 = vmatprep.subr.bf16.mxu0 0
    %2295 = vmatpush1.bf16.msra.mxu0 %v2281
    %2296 = vmatprep.subr.bf16.mxu0 0
    %2297 = vmatpush1.bf16.msra.mxu0 %v2282
    %2298 = vmatprep.subr.bf16.mxu0 0
    %2299 = vmatpush1.bf16.msra.mxu0 0
    %2300 = vmatprep.subr.bf16.mxu0 0
    %2301 = vmatpush1.bf16.msra.mxu0 0
    %2302 = vmatprep.subr.bf16.mxu0 0
    %2303 = vmatpush1.bf16.msra.mxu0 0
    %2304 = vmatprep.subr.bf16.mxu0 0
    %2305 = vmatpush1.bf16.msra.mxu0 0
    %2306 = vmatprep.subr.bf16.mxu0 0
    %2307 = vmatpush1.bf16.msra.mxu0 0
    %2308 = vmatprep.subr.bf16.mxu0 0
    %2309 = vmatpush1.bf16.msra.mxu0 0
    %2310 = vmatprep.subr.bf16.mxu0 0
    %2311 = vmatpush1.bf16.msra.mxu0 0
    %2312 = vmatprep.subr.bf16.mxu0 0
    %2313 = vmatpush1.bf16.msra.mxu0 0
    %2314 = vmatprep.subr.bf16.mxu0 0
    %2315 = vmatpush1.bf16.msra.mxu0 0
    %2316 = vmatprep.subr.bf16.mxu0 0
    %2317 = vmatpush1.bf16.msra.mxu0 0
    %2318 = vmatprep.subr.bf16.mxu0 0
    %2319 = vmatpush1.bf16.msra.mxu0 0
    %2320 = vmatprep.subr.bf16.mxu0 0
    %2321 = vmatpush1.bf16.msra.mxu0 0
    %2322 = vmatprep.mubr.bf16.mxu0 0
    %2323 = vmatmul.mubr.bf16.gmra.mrb[0].mxu0 %v2288
    %v2324 = vpop.f32.mrb[0].mxu0
    %v2325 = vadd.f32 0.0, %v2324
    %v2326 = vpop.f32.mrb[0].mxu0
    %v2327 = vpop.f32.mrb[0].mxu0
    %v2328 = vpop.f32.mrb[0].mxu0
    %2329 = vdwg.mxu0
    %v2338 = vunpack.c.l.b16 %v1328
    %v2339 = vunpack.c.l.b16 %v1329
    %v2340 = vunpack.c.l.b16 %v1330
    %v2341 = vunpack.c.l.b16 %v1331
    %v2342 = vunpack.c.l.b16 %v1332
    %v2343 = vunpack.c.l.b16 %v1333
    %v2344 = vunpack.c.l.b16 %v1334
    %v2345 = vunpack.c.l.b16 %v1335
    %v2346 = vpack.c.b16 %v2339, %v2338
    %v2347 = vpack.c.b16 %v2341, %v2340
    %v2348 = vpack.c.b16 %v2343, %v2342
    %v2349 = vpack.c.b16 %v2345, %v2344
    %v2355 = vsel %vm418, %v1208, 0
    %2357 = vmatprep.subr.bf16.mxu0 0
    %2358 = vmatpush1.bf16.msra.mxu0 %v2346
    %2359 = vmatprep.subr.bf16.mxu0 0
    %2360 = vmatpush1.bf16.msra.mxu0 %v2347
    %2361 = vmatprep.subr.bf16.mxu0 0
    %2362 = vmatpush1.bf16.msra.mxu0 %v2348
    %2363 = vmatprep.subr.bf16.mxu0 0
    %2364 = vmatpush1.bf16.msra.mxu0 %v2349
    %2365 = vmatprep.subr.bf16.mxu0 0
    %2366 = vmatpush1.bf16.msra.mxu0 0
    %2367 = vmatprep.subr.bf16.mxu0 0
    %2368 = vmatpush1.bf16.msra.mxu0 0
    %2369 = vmatprep.subr.bf16.mxu0 0
    %2370 = vmatpush1.bf16.msra.mxu0 0
    %2371 = vmatprep.subr.bf16.mxu0 0
    %2372 = vmatpush1.bf16.msra.mxu0 0
    %2373 = vmatprep.subr.bf16.mxu0 0
    %2374 = vmatpush1.bf16.msra.mxu0 0
    %2375 = vmatprep.subr.bf16.mxu0 0
    %2376 = vmatpush1.bf16.msra.mxu0 0
    %2377 = vmatprep.subr.bf16.mxu0 0
    %2378 = vmatpush1.bf16.msra.mxu0 0
    %2379 = vmatprep.subr.bf16.mxu0 0
    %2380 = vmatpush1.bf16.msra.mxu0 0
    %2381 = vmatprep.subr.bf16.mxu0 0
    %2382 = vmatpush1.bf16.msra.mxu0 0
    %2383 = vmatprep.subr.bf16.mxu0 0
    %2384 = vmatpush1.bf16.msra.mxu0 0
    %2385 = vmatprep.subr.bf16.mxu0 0
    %2386 = vmatpush1.bf16.msra.mxu0 0
    %2387 = vmatprep.subr.bf16.mxu0 0
    %2388 = vmatpush1.bf16.msra.mxu0 0
    %2389 = vmatprep.mubr.bf16.mxu0 0
    %2390 = vmatmul.mubr.bf16.gmra.mrb[0].mxu0 %v2355
    %v2391 = vpop.f32.mrb[0].mxu0
    %v2392 = vadd.f32 0.0, %v2391
    %v2393 = vpop.f32.mrb[0].mxu0
    %v2394 = vpop.f32.mrb[0].mxu0
    %v2395 = vpop.f32.mrb[0].mxu0
    %2396 = vdwg.mxu0
    %v2405 = vunpack.c.l.b16 %v1336
    %v2406 = vunpack.c.l.b16 %v1337
    %v2407 = vunpack.c.l.b16 %v1338
    %v2408 = vunpack.c.l.b16 %v1339
    %v2409 = vunpack.c.l.b16 %v1340
    %v2410 = vunpack.c.l.b16 %v1341
    %v2411 = vunpack.c.l.b16 %v1342
    %v2412 = vunpack.c.l.b16 %v1343
    %v2413 = vpack.c.b16 %v2406, %v2405
    %v2414 = vpack.c.b16 %v2408, %v2407
    %v2415 = vpack.c.b16 %v2410, %v2409
    %v2416 = vpack.c.b16 %v2412, %v2411
    %v2422 = vsel %vm418, %v1209, 0
    %2424 = vmatprep.subr.bf16.mxu0 0
    %2425 = vmatpush1.bf16.msra.mxu0 %v2413
    %2426 = vmatprep.subr.bf16.mxu0 0
    %2427 = vmatpush1.bf16.msra.mxu0 %v2414
    %2428 = vmatprep.subr.bf16.mxu0 0
    %2429 = vmatpush1.bf16.msra.mxu0 %v2415
    %2430 = vmatprep.subr.bf16.mxu0 0
    %2431 = vmatpush1.bf16.msra.mxu0 %v2416
    %2432 = vmatprep.subr.bf16.mxu0 0
    %2433 = vmatpush1.bf16.msra.mxu0 0
    %2434 = vmatprep.subr.bf16.mxu0 0
    %2435 = vmatpush1.bf16.msra.mxu0 0
    %2436 = vmatprep.subr.bf16.mxu0 0
    %2437 = vmatpush1.bf16.msra.mxu0 0
    %2438 = vmatprep.subr.bf16.mxu0 0
    %2439 = vmatpush1.bf16.msra.mxu0 0
    %2440 = vmatprep.subr.bf16.mxu0 0
    %2441 = vmatpush1.bf16.msra.mxu0 0
    %2442 = vmatprep.subr.bf16.mxu0 0
    %2443 = vmatpush1.bf16.msra.mxu0 0
    %2444 = vmatprep.subr.bf16.mxu0 0
    %2445 = vmatpush1.bf16.msra.mxu0 0
    %2446 = vmatprep.subr.bf16.mxu0 0
    %2447 = vmatpush1.bf16.msra.mxu0 0
    %2448 = vmatprep.subr.bf16.mxu0 0
    %2449 = vmatpush1.bf16.msra.mxu0 0
    %2450 = vmatprep.subr.bf16.mxu0 0
    %2451 = vmatpush1.bf16.msra.mxu0 0
    %2452 = vmatprep.subr.bf16.mxu0 0
    %2453 = vmatpush1.bf16.msra.mxu0 0
    %2454 = vmatprep.subr.bf16.mxu0 0
    %2455 = vmatpush1.bf16.msra.mxu0 0
    %2456 = vmatprep.mubr.bf16.mxu0 0
    %2457 = vmatmul.mubr.bf16.gmra.mrb[0].mxu0 %v2422
    %v2458 = vpop.f32.mrb[0].mxu0
    %v2459 = vadd.f32 0.0, %v2458
    %v2460 = vpop.f32.mrb[0].mxu0
    %v2461 = vpop.f32.mrb[0].mxu0
    %v2462 = vpop.f32.mrb[0].mxu0
    %2463 = vdwg.mxu0
    %v2472 = vunpack.c.l.b16 %v1344
    %v2473 = vunpack.c.l.b16 %v1345
    %v2474 = vunpack.c.l.b16 %v1346
    %v2475 = vunpack.c.l.b16 %v1347
    %v2476 = vunpack.c.l.b16 %v1348
    %v2477 = vunpack.c.l.b16 %v1349
    %v2478 = vunpack.c.l.b16 %v1350
    %v2479 = vunpack.c.l.b16 %v1351
    %v2480 = vpack.c.b16 %v2473, %v2472
    %v2481 = vpack.c.b16 %v2475, %v2474
    %v2482 = vpack.c.b16 %v2477, %v2476
    %v2483 = vpack.c.b16 %v2479, %v2478
    %v2489 = vsel %vm418, %v1210, 0
    %2491 = vmatprep.subr.bf16.mxu0 0
    %2492 = vmatpush1.bf16.msra.mxu0 %v2480
    %2493 = vmatprep.subr.bf16.mxu0 0
    %2494 = vmatpush1.bf16.msra.mxu0 %v2481
    %2495 = vmatprep.subr.bf16.mxu0 0
    %2496 = vmatpush1.bf16.msra.mxu0 %v2482
    %2497 = vmatprep.subr.bf16.mxu0 0
    %2498 = vmatpush1.bf16.msra.mxu0 %v2483
    %2499 = vmatprep.subr.bf16.mxu0 0
    %2500 = vmatpush1.bf16.msra.mxu0 0
    %2501 = vmatprep.subr.bf16.mxu0 0
    %2502 = vmatpush1.bf16.msra.mxu0 0
    %2503 = vmatprep.subr.bf16.mxu0 0
    %2504 = vmatpush1.bf16.msra.mxu0 0
    %2505 = vmatprep.subr.bf16.mxu0 0
    %2506 = vmatpush1.bf16.msra.mxu0 0
    %2507 = vmatprep.subr.bf16.mxu0 0
    %2508 = vmatpush1.bf16.msra.mxu0 0
    %2509 = vmatprep.subr.bf16.mxu0 0
    %2510 = vmatpush1.bf16.msra.mxu0 0
    %2511 = vmatprep.subr.bf16.mxu0 0
    %2512 = vmatpush1.bf16.msra.mxu0 0
    %2513 = vmatprep.subr.bf16.mxu0 0
    %2514 = vmatpush1.bf16.msra.mxu0 0
    %2515 = vmatprep.subr.bf16.mxu0 0
    %2516 = vmatpush1.bf16.msra.mxu0 0
    %2517 = vmatprep.subr.bf16.mxu0 0
    %2518 = vmatpush1.bf16.msra.mxu0 0
    %2519 = vmatprep.subr.bf16.mxu0 0
    %2520 = vmatpush1.bf16.msra.mxu0 0
    %2521 = vmatprep.subr.bf16.mxu0 0
    %2522 = vmatpush1.bf16.msra.mxu0 0
    %2523 = vmatprep.mubr.bf16.mxu0 0
    %2524 = vmatmul.mubr.bf16.gmra.mrb[0].mxu0 %v2489
    %v2525 = vpop.f32.mrb[0].mxu0
    %v2526 = vadd.f32 0.0, %v2525
    %v2527 = vpop.f32.mrb[0].mxu0
    %v2528 = vpop.f32.mrb[0].mxu0
    %v2529 = vpop.f32.mrb[0].mxu0
    %2530 = vdwg.mxu0
    %v2539 = vunpack.c.l.b16 %v1352
    %v2540 = vunpack.c.l.b16 %v1353
    %v2541 = vunpack.c.l.b16 %v1354
    %v2542 = vunpack.c.l.b16 %v1355
    %v2543 = vunpack.c.l.b16 %v1356
    %v2544 = vunpack.c.l.b16 %v1357
    %v2545 = vunpack.c.l.b16 %v1358
    %v2546 = vunpack.c.l.b16 %v1359
    %v2547 = vpack.c.b16 %v2540, %v2539
    %v2548 = vpack.c.b16 %v2542, %v2541
    %v2549 = vpack.c.b16 %v2544, %v2543
    %v2550 = vpack.c.b16 %v2546, %v2545
    %v2556 = vsel %vm418, %v1211, 0
    %2558 = vmatprep.subr.bf16.mxu0 0
    %2559 = vmatpush1.bf16.msra.mxu0 %v2547
    %2560 = vmatprep.subr.bf16.mxu0 0
    %2561 = vmatpush1.bf16.msra.mxu0 %v2548
    %2562 = vmatprep.subr.bf16.mxu0 0
    %2563 = vmatpush1.bf16.msra.mxu0 %v2549
    %2564 = vmatprep.subr.bf16.mxu0 0
    %2565 = vmatpush1.bf16.msra.mxu0 %v2550
    %2566 = vmatprep.subr.bf16.mxu0 0
    %2567 = vmatpush1.bf16.msra.mxu0 0
    %2568 = vmatprep.subr.bf16.mxu0 0
    %2569 = vmatpush1.bf16.msra.mxu0 0
    %2570 = vmatprep.subr.bf16.mxu0 0
    %2571 = vmatpush1.bf16.msra.mxu0 0
    %2572 = vmatprep.subr.bf16.mxu0 0
    %2573 = vmatpush1.bf16.msra.mxu0 0
    %2574 = vmatprep.subr.bf16.mxu0 0
    %2575 = vmatpush1.bf16.msra.mxu0 0
    %2576 = vmatprep.subr.bf16.mxu0 0
    %2577 = vmatpush1.bf16.msra.mxu0 0
    %2578 = vmatprep.subr.bf16.mxu0 0
    %2579 = vmatpush1.bf16.msra.mxu0 0
    %2580 = vmatprep.subr.bf16.mxu0 0
    %2581 = vmatpush1.bf16.msra.mxu0 0
    %2582 = vmatprep.subr.bf16.mxu0 0
    %2583 = vmatpush1.bf16.msra.mxu0 0
    %2584 = vmatprep.subr.bf16.mxu0 0
    %2585 = vmatpush1.bf16.msra.mxu0 0
    %2586 = vmatprep.subr.bf16.mxu0 0
    %2587 = vmatpush1.bf16.msra.mxu0 0
    %2588 = vmatprep.subr.bf16.mxu0 0
    %2589 = vmatpush1.bf16.msra.mxu0 0
    %2590 = vmatprep.mubr.bf16.mxu0 0
    %2591 = vmatmul.mubr.bf16.gmra.mrb[0].mxu0 %v2556
    %v2592 = vpop.f32.mrb[0].mxu0
    %v2593 = vadd.f32 0.0, %v2592
    %v2594 = vpop.f32.mrb[0].mxu0
    %v2595 = vpop.f32.mrb[0].mxu0
    %v2596 = vpop.f32.mrb[0].mxu0
    %2597 = vdwg.mxu0
    %v2606 = vunpack.c.l.b16 %v1360
    %v2607 = vunpack.c.l.b16 %v1361
    %v2608 = vunpack.c.l.b16 %v1362
    %v2609 = vunpack.c.l.b16 %v1363
    %v2610 = vunpack.c.l.b16 %v1364
    %v2611 = vunpack.c.l.b16 %v1365
    %v2612 = vunpack.c.l.b16 %v1366
    %v2613 = vunpack.c.l.b16 %v1367
    %v2614 = vpack.c.b16 %v2607, %v2606
    %v2615 = vpack.c.b16 %v2609, %v2608
    %v2616 = vpack.c.b16 %v2611, %v2610
    %v2617 = vpack.c.b16 %v2613, %v2612
    %v2623 = vsel %vm418, %v1212, 0
    %2625 = vmatprep.subr.bf16.mxu0 0
    %2626 = vmatpush1.bf16.msra.mxu0 %v2614
    %2627 = vmatprep.subr.bf16.mxu0 0
    %2628 = vmatpush1.bf16.msra.mxu0 %v2615
    %2629 = vmatprep.subr.bf16.mxu0 0
    %2630 = vmatpush1.bf16.msra.mxu0 %v2616
    %2631 = vmatprep.subr.bf16.mxu0 0
    %2632 = vmatpush1.bf16.msra.mxu0 %v2617
    %2633 = vmatprep.subr.bf16.mxu0 0
    %2634 = vmatpush1.bf16.msra.mxu0 0
    %2635 = vmatprep.subr.bf16.mxu0 0
    %2636 = vmatpush1.bf16.msra.mxu0 0
    %2637 = vmatprep.subr.bf16.mxu0 0
    %2638 = vmatpush1.bf16.msra.mxu0 0
    %2639 = vmatprep.subr.bf16.mxu0 0
    %2640 = vmatpush1.bf16.msra.mxu0 0
    %2641 = vmatprep.subr.bf16.mxu0 0
    %2642 = vmatpush1.bf16.msra.mxu0 0
    %2643 = vmatprep.subr.bf16.mxu0 0
    %2644 = vmatpush1.bf16.msra.mxu0 0
    %2645 = vmatprep.subr.bf16.mxu0 0
    %2646 = vmatpush1.bf16.msra.mxu0 0
    %2647 = vmatprep.subr.bf16.mxu0 0
    %2648 = vmatpush1.bf16.msra.mxu0 0
    %2649 = vmatprep.subr.bf16.mxu0 0
    %2650 = vmatpush1.bf16.msra.mxu0 0
    %2651 = vmatprep.subr.bf16.mxu0 0
    %2652 = vmatpush1.bf16.msra.mxu0 0
    %2653 = vmatprep.subr.bf16.mxu0 0
    %2654 = vmatpush1.bf16.msra.mxu0 0
    %2655 = vmatprep.subr.bf16.mxu0 0
    %2656 = vmatpush1.bf16.msra.mxu0 0
    %2657 = vmatprep.mubr.bf16.mxu0 0
    %2658 = vmatmul.mubr.bf16.gmra.mrb[0].mxu0 %v2623
    %v2659 = vpop.f32.mrb[0].mxu0
    %v2660 = vadd.f32 0.0, %v2659
    %v2661 = vpop.f32.mrb[0].mxu0
    %v2662 = vpop.f32.mrb[0].mxu0
    %v2663 = vpop.f32.mrb[0].mxu0
    %2664 = vdwg.mxu0
    %v2673 = vunpack.c.l.b16 %v1368
    %v2674 = vunpack.c.l.b16 %v1369
    %v2675 = vunpack.c.l.b16 %v1370
    %v2676 = vunpack.c.l.b16 %v1371
    %v2677 = vunpack.c.l.b16 %v1372
    %v2678 = vunpack.c.l.b16 %v1373
    %v2679 = vunpack.c.l.b16 %v1374
    %v2680 = vunpack.c.l.b16 %v1375
    %v2681 = vpack.c.b16 %v2674, %v2673
    %v2682 = vpack.c.b16 %v2676, %v2675
    %v2683 = vpack.c.b16 %v2678, %v2677
    %v2684 = vpack.c.b16 %v2680, %v2679
    %v2690 = vsel %vm418, %v1213, 0
    %2692 = vmatprep.subr.bf16.mxu0 0
    %2693 = vmatpush1.bf16.msra.mxu0 %v2681
    %2694 = vmatprep.subr.bf16.mxu0 0
    %2695 = vmatpush1.bf16.msra.mxu0 %v2682
    %2696 = vmatprep.subr.bf16.mxu0 0
    %2697 = vmatpush1.bf16.msra.mxu0 %v2683
    %2698 = vmatprep.subr.bf16.mxu0 0
    %2699 = vmatpush1.bf16.msra.mxu0 %v2684
    %2700 = vmatprep.subr.bf16.mxu0 0
    %2701 = vmatpush1.bf16.msra.mxu0 0
    %2702 = vmatprep.subr.bf16.mxu0 0
    %2703 = vmatpush1.bf16.msra.mxu0 0
    %2704 = vmatprep.subr.bf16.mxu0 0
    %2705 = vmatpush1.bf16.msra.mxu0 0
    %2706 = vmatprep.subr.bf16.mxu0 0
    %2707 = vmatpush1.bf16.msra.mxu0 0
    %2708 = vmatprep.subr.bf16.mxu0 0
    %2709 = vmatpush1.bf16.msra.mxu0 0
    %2710 = vmatprep.subr.bf16.mxu0 0
    %2711 = vmatpush1.bf16.msra.mxu0 0
    %2712 = vmatprep.subr.bf16.mxu0 0
    %2713 = vmatpush1.bf16.msra.mxu0 0
    %2714 = vmatprep.subr.bf16.mxu0 0
    %2715 = vmatpush1.bf16.msra.mxu0 0
    %2716 = vmatprep.subr.bf16.mxu0 0
    %2717 = vmatpush1.bf16.msra.mxu0 0
    %2718 = vmatprep.subr.bf16.mxu0 0
    %2719 = vmatpush1.bf16.msra.mxu0 0
    %2720 = vmatprep.subr.bf16.mxu0 0
    %2721 = vmatpush1.bf16.msra.mxu0 0
    %2722 = vmatprep.subr.bf16.mxu0 0
    %2723 = vmatpush1.bf16.msra.mxu0 0
    %2724 = vmatprep.mubr.bf16.mxu0 0
    %2725 = vmatmul.mubr.bf16.gmra.mrb[0].mxu0 %v2690
    %v2726 = vpop.f32.mrb[0].mxu0
    %v2727 = vadd.f32 0.0, %v2726
    %v2728 = vpop.f32.mrb[0].mxu0
    %v2729 = vpop.f32.mrb[0].mxu0
    %v2730 = vpop.f32.mrb[0].mxu0
    %2731 = vdwg.mxu0
    %v2740 = vunpack.c.l.b16 %v1376
    %v2741 = vunpack.c.l.b16 %v1377
    %v2742 = vunpack.c.l.b16 %v1378
    %v2743 = vunpack.c.l.b16 %v1379
    %v2744 = vunpack.c.l.b16 %v1380
    %v2745 = vunpack.c.l.b16 %v1381
    %v2746 = vunpack.c.l.b16 %v1382
    %v2747 = vunpack.c.l.b16 %v1383
    %v2748 = vpack.c.b16 %v2741, %v2740
    %v2749 = vpack.c.b16 %v2743, %v2742
    %v2750 = vpack.c.b16 %v2745, %v2744
    %v2751 = vpack.c.b16 %v2747, %v2746
    %v2757 = vsel %vm418, %v1214, 0
    %2759 = vmatprep.subr.bf16.mxu0 0
    %2760 = vmatpush1.bf16.msra.mxu0 %v2748
    %2761 = vmatprep.subr.bf16.mxu0 0
    %2762 = vmatpush1.bf16.msra.mxu0 %v2749
    %2763 = vmatprep.subr.bf16.mxu0 0
    %2764 = vmatpush1.bf16.msra.mxu0 %v2750
    %2765 = vmatprep.subr.bf16.mxu0 0
    %2766 = vmatpush1.bf16.msra.mxu0 %v2751
    %2767 = vmatprep.subr.bf16.mxu0 0
    %2768 = vmatpush1.bf16.msra.mxu0 0
    %2769 = vmatprep.subr.bf16.mxu0 0
    %2770 = vmatpush1.bf16.msra.mxu0 0
    %2771 = vmatprep.subr.bf16.mxu0 0
    %2772 = vmatpush1.bf16.msra.mxu0 0
    %2773 = vmatprep.subr.bf16.mxu0 0
    %2774 = vmatpush1.bf16.msra.mxu0 0
    %2775 = vmatprep.subr.bf16.mxu0 0
    %2776 = vmatpush1.bf16.msra.mxu0 0
    %2777 = vmatprep.subr.bf16.mxu0 0
    %2778 = vmatpush1.bf16.msra.mxu0 0
    %2779 = vmatprep.subr.bf16.mxu0 0
    %2780 = vmatpush1.bf16.msra.mxu0 0
    %2781 = vmatprep.subr.bf16.mxu0 0
    %2782 = vmatpush1.bf16.msra.mxu0 0
    %2783 = vmatprep.subr.bf16.mxu0 0
    %2784 = vmatpush1.bf16.msra.mxu0 0
    %2785 = vmatprep.subr.bf16.mxu0 0
    %2786 = vmatpush1.bf16.msra.mxu0 0
    %2787 = vmatprep.subr.bf16.mxu0 0
    %2788 = vmatpush1.bf16.msra.mxu0 0
    %2789 = vmatprep.subr.bf16.mxu0 0
    %2790 = vmatpush1.bf16.msra.mxu0 0
    %2791 = vmatprep.mubr.bf16.mxu0 0
    %2792 = vmatmul.mubr.bf16.gmra.mrb[0].mxu0 %v2757
    %v2793 = vpop.f32.mrb[0].mxu0
    %v2794 = vadd.f32 0.0, %v2793
    %v2795 = vpop.f32.mrb[0].mxu0
    %v2796 = vpop.f32.mrb[0].mxu0
    %v2797 = vpop.f32.mrb[0].mxu0
    %2798 = vdwg.mxu0
    %v2807 = vunpack.c.l.b16 %v1384
    %v2808 = vunpack.c.l.b16 %v1385
    %v2809 = vunpack.c.l.b16 %v1386
    %v2810 = vunpack.c.l.b16 %v1387
    %v2811 = vunpack.c.l.b16 %v1388
    %v2812 = vunpack.c.l.b16 %v1389
    %v2813 = vunpack.c.l.b16 %v1390
    %v2814 = vunpack.c.l.b16 %v1391
    %v2815 = vpack.c.b16 %v2808, %v2807
    %v2816 = vpack.c.b16 %v2810, %v2809
    %v2817 = vpack.c.b16 %v2812, %v2811
    %v2818 = vpack.c.b16 %v2814, %v2813
    %v2824 = vsel %vm418, %v1215, 0
    %2826 = vmatprep.subr.bf16.mxu0 0
    %2827 = vmatpush1.bf16.msra.mxu0 %v2815
    %2828 = vmatprep.subr.bf16.mxu0 0
    %2829 = vmatpush1.bf16.msra.mxu0 %v2816
    %2830 = vmatprep.subr.bf16.mxu0 0
    %2831 = vmatpush1.bf16.msra.mxu0 %v2817
    %2832 = vmatprep.subr.bf16.mxu0 0
    %2833 = vmatpush1.bf16.msra.mxu0 %v2818
    %2834 = vmatprep.subr.bf16.mxu0 0
    %2835 = vmatpush1.bf16.msra.mxu0 0
    %2836 = vmatprep.subr.bf16.mxu0 0
    %2837 = vmatpush1.bf16.msra.mxu0 0
    %2838 = vmatprep.subr.bf16.mxu0 0
    %2839 = vmatpush1.bf16.msra.mxu0 0
    %2840 = vmatprep.subr.bf16.mxu0 0
    %2841 = vmatpush1.bf16.msra.mxu0 0
    %2842 = vmatprep.subr.bf16.mxu0 0
    %2843 = vmatpush1.bf16.msra.mxu0 0
    %2844 = vmatprep.subr.bf16.mxu0 0
    %2845 = vmatpush1.bf16.msra.mxu0 0
    %2846 = vmatprep.subr.bf16.mxu0 0
    %2847 = vmatpush1.bf16.msra.mxu0 0
    %2848 = vmatprep.subr.bf16.mxu0 0
    %2849 = vmatpush1.bf16.msra.mxu0 0
    %2850 = vmatprep.subr.bf16.mxu0 0
    %2851 = vmatpush1.bf16.msra.mxu0 0
    %2852 = vmatprep.subr.bf16.mxu0 0
    %2853 = vmatpush1.bf16.msra.mxu0 0
    %2854 = vmatprep.subr.bf16.mxu0 0
    %2855 = vmatpush1.bf16.msra.mxu0 0
    %2856 = vmatprep.subr.bf16.mxu0 0
    %2857 = vmatpush1.bf16.msra.mxu0 0
    %2858 = vmatprep.mubr.bf16.mxu0 0
    %2859 = vmatmul.mubr.bf16.gmra.mrb[0].mxu0 %v2824
    %v2860 = vpop.f32.mrb[0].mxu0
    %v2861 = vadd.f32 0.0, %v2860
    %v2862 = vpop.f32.mrb[0].mxu0
    %v2863 = vpop.f32.mrb[0].mxu0
    %v2864 = vpop.f32.mrb[0].mxu0
    %2865 = vdwg.mxu0
    %v2866 = vadd.f32 %v1454, %v1521
    %v2867 = vadd.f32 %v2866, %v1588
    %v2868 = vadd.f32 %v2867, %v1655
    %v2869 = vadd.f32 %v2868, %v1722
    %v2870 = vadd.f32 %v2869, %v1789
    %v2871 = vadd.f32 %v2870, %v1856
    %v2872 = vadd.f32 %v2871, %v1923
    %v2873 = vadd.f32 %v2872, %v1990
    %v2874 = vadd.f32 %v2873, %v2057
    %v2875 = vadd.f32 %v2874, %v2124
    %v2876 = vadd.f32 %v2875, %v2191
    %v2877 = vadd.f32 %v2876, %v2258
    %v2878 = vadd.f32 %v2877, %v2325
    %v2879 = vadd.f32 %v2878, %v2392
    %v2880 = vadd.f32 %v2879, %v2459
    %v2881 = vadd.f32 %v2880, %v2526
    %v2882 = vadd.f32 %v2881, %v2593
    %v2883 = vadd.f32 %v2882, %v2660
    %v2884 = vadd.f32 %v2883, %v2727
    %v2885 = vadd.f32 %v2884, %v2794
    %v2886 = vadd.f32 %v2885, %v2861
    %v2887 = vld [vmem:[%s8] sm:$0x1]
    %v2889 = vlaneseq
    %v2890 = vshrl.u32 %v2889, 7
    %v2891 = vsub.s32 0, %v2890
    %v2892 = vrot.slane %v2887, %v2891
    %v2894 = vadd.f32 %v2886, %v2892
    %v2895 = vmax.f32 %v2894, 0.0
    %v2896 = vpack.c.bf16 %v2895, %v2895
    %v2897 = vld [vmem:[#allocation5] sm:$0xf]
    %v2898 = vld [vmem:[#allocation5 + $0x4] sm:$0xf]
    %v2899 = vld [vmem:[#allocation5 + $0x8] sm:$0xf]
    %v2900 = vld [vmem:[#allocation5 + $0xc] sm:$0xf]
    %v2901 = vld [vmem:[#allocation5 + $0x10] sm:$0xf]
    %v2902 = vld [vmem:[#allocation5 + $0x14] sm:$0xf]
    %v2903 = vld [vmem:[#allocation5 + $0x18] sm:$0xf]
    %v2904 = vld [vmem:[#allocation5 + $0x1c] sm:$0xf]
    %v2905 = vld [vmem:[#allocation5 + $0x20] sm:$0xf]
    %v2906 = vld [vmem:[#allocation5 + $0x24] sm:$0xf]
    %v2907 = vld [vmem:[#allocation5 + $0x28] sm:$0xf]
    %v2908 = vld [vmem:[#allocation5 + $0x2c] sm:$0xf]
    %v2909 = vld [vmem:[#allocation5 + $0x30] sm:$0xf]
    %v2910 = vld [vmem:[#allocation5 + $0x34] sm:$0xf]
    %v2911 = vld [vmem:[#allocation5 + $0x38] sm:$0xf]
    %v2912 = vld [vmem:[#allocation5 + $0x3c] sm:$0xf]
    %v2913 = vld [vmem:[%s10] sm:$0x1]
    %v2915 = vlaneseq
    %v2916 = vshrl.u32 %v2915, 7
    %v2917 = vsub.s32 0, %v2916
    %v2918 = vrot.slane %v2913, %v2917
    %v2936 = vunpack.c.l.b16 %v2897
    %v2937 = vunpack.c.l.b16 %v2898
    %v2938 = vunpack.c.l.b16 %v2899
    %v2939 = vunpack.c.l.b16 %v2900
    %v2940 = vunpack.c.l.b16 %v2901
    %v2941 = vunpack.c.l.b16 %v2902
    %v2942 = vunpack.c.l.b16 %v2903
    %v2943 = vunpack.c.l.b16 %v2904
    %v2944 = vunpack.c.l.b16 %v2905
    %v2945 = vunpack.c.l.b16 %v2906
    %v2946 = vunpack.c.l.b16 %v2907
    %v2947 = vunpack.c.l.b16 %v2908
    %v2948 = vunpack.c.l.b16 %v2909
    %v2949 = vunpack.c.l.b16 %v2910
    %v2950 = vunpack.c.l.b16 %v2911
    %v2951 = vunpack.c.l.b16 %v2912
    %v2952 = vpack.c.b16 %v2937, %v2936
    %v2953 = vpack.c.b16 %v2939, %v2938
    %v2954 = vpack.c.b16 %v2941, %v2940
    %v2955 = vpack.c.b16 %v2943, %v2942
    %v2956 = vpack.c.b16 %v2945, %v2944
    %v2957 = vpack.c.b16 %v2947, %v2946
    %v2958 = vpack.c.b16 %v2949, %v2948
    %v2959 = vpack.c.b16 %v2951, %v2950
    %2968 = vmatprep.subr.bf16.mxu0 0
    %2969 = vmatpush1.bf16.msra.mxu0 %v2952
    %2970 = vmatprep.subr.bf16.mxu0 0
    %2971 = vmatpush1.bf16.msra.mxu0 %v2953
    %2972 = vmatprep.subr.bf16.mxu0 0
    %2973 = vmatpush1.bf16.msra.mxu0 %v2954
    %2974 = vmatprep.subr.bf16.mxu0 0
    %2975 = vmatpush1.bf16.msra.mxu0 %v2955
    %2976 = vmatprep.subr.bf16.mxu0 0
    %2977 = vmatpush1.bf16.msra.mxu0 %v2956
    %2978 = vmatprep.subr.bf16.mxu0 0
    %2979 = vmatpush1.bf16.msra.mxu0 %v2957
    %2980 = vmatprep.subr.bf16.mxu0 0
    %2981 = vmatpush1.bf16.msra.mxu0 %v2958
    %2982 = vmatprep.subr.bf16.mxu0 0
    %2983 = vmatpush1.bf16.msra.mxu0 %v2959
    %2984 = vmatprep.subr.bf16.mxu0 0
    %2985 = vmatpush1.bf16.msra.mxu0 0
    %2986 = vmatprep.subr.bf16.mxu0 0
    %2987 = vmatpush1.bf16.msra.mxu0 0
    %2988 = vmatprep.subr.bf16.mxu0 0
    %2989 = vmatpush1.bf16.msra.mxu0 0
    %2990 = vmatprep.subr.bf16.mxu0 0
    %2991 = vmatpush1.bf16.msra.mxu0 0
    %2992 = vmatprep.subr.bf16.mxu0 0
    %2993 = vmatpush1.bf16.msra.mxu0 0
    %2994 = vmatprep.subr.bf16.mxu0 0
    %2995 = vmatpush1.bf16.msra.mxu0 0
    %2996 = vmatprep.subr.bf16.mxu0 0
    %2997 = vmatpush1.bf16.msra.mxu0 0
    %2998 = vmatprep.subr.bf16.mxu0 0
    %2999 = vmatpush1.bf16.msra.mxu0 0
    %3000 = vmatprep.mubr.bf16.mxu0 0
    %3001 = vmatmul.mubr.bf16.gmra.mrb[0].mxu0 %v2896
    %v3002 = vpop.f32.mrb[0].mxu0
    %v3003 = vadd.f32 %v2918, %v3002
    %v3004 = vpop.f32.mrb[0].mxu0
    %v3005 = vpop.f32.mrb[0].mxu0
    %v3006 = vpop.f32.mrb[0].mxu0
    %3007 = vdwg.mxu0
    %v3008 = vmax.f32 %v3003, 0.0
    %v3009 = vpack.c.bf16 %v3008, %v3008
    %v3010 = vld [vmem:[#allocation7] sm:$0xf]
    %v3011 = vld [vmem:[#allocation7 + $0x4] sm:$0xf]
    %v3012 = vld [vmem:[#allocation7 + $0x8] sm:$0xf]
    %v3013 = vld [vmem:[#allocation7 + $0xc] sm:$0xf]
    %v3014 = vld [vmem:[#allocation7 + $0x10] sm:$0xf]
    %v3015 = vld [vmem:[#allocation7 + $0x14] sm:$0xf]
    %v3016 = vld [vmem:[#allocation7 + $0x18] sm:$0xf]
    %v3017 = vld [vmem:[#allocation7 + $0x1c] sm:$0xf]
    %v3018 = vld [vmem:[#allocation7 + $0x20] sm:$0xf]
    %v3019 = vld [vmem:[#allocation7 + $0x24] sm:$0xf]
    %v3020 = vld [vmem:[#allocation7 + $0x28] sm:$0xf]
    %v3021 = vld [vmem:[#allocation7 + $0x2c] sm:$0xf]
    %v3022 = vld [vmem:[#allocation7 + $0x30] sm:$0xf]
    %v3023 = vld [vmem:[#allocation7 + $0x34] sm:$0xf]
    %v3024 = vld [vmem:[#allocation7 + $0x38] sm:$0xf]
    %v3025 = vld [vmem:[#allocation7 + $0x3c] sm:$0xf]
    %v3026 = vld [vmem:[%s12] sm:$0x1]
    %v3028 = vlaneseq
    %v3029 = vshrl.u32 %v3028, 7
    %v3030 = vsub.s32 0, %v3029
    %v3031 = vrot.slane %v3026, %v3030
    %v3049 = vunpack.c.l.b16 %v3010
    %v3050 = vunpack.c.l.b16 %v3011
    %v3051 = vunpack.c.l.b16 %v3012
    %v3052 = vunpack.c.l.b16 %v3013
    %v3053 = vunpack.c.l.b16 %v3014
    %v3054 = vunpack.c.l.b16 %v3015
    %v3055 = vunpack.c.l.b16 %v3016
    %v3056 = vunpack.c.l.b16 %v3017
    %v3057 = vunpack.c.l.b16 %v3018
    %v3058 = vunpack.c.l.b16 %v3019
    %v3059 = vunpack.c.l.b16 %v3020
    %v3060 = vunpack.c.l.b16 %v3021
    %v3061 = vunpack.c.l.b16 %v3022
    %v3062 = vunpack.c.l.b16 %v3023
    %v3063 = vunpack.c.l.b16 %v3024
    %v3064 = vunpack.c.l.b16 %v3025
    %v3065 = vpack.c.b16 %v3050, %v3049
    %v3066 = vpack.c.b16 %v3052, %v3051
    %v3067 = vpack.c.b16 %v3054, %v3053
    %v3068 = vpack.c.b16 %v3056, %v3055
    %v3069 = vpack.c.b16 %v3058, %v3057
    %v3070 = vpack.c.b16 %v3060, %v3059
    %v3071 = vpack.c.b16 %v3062, %v3061
    %v3072 = vpack.c.b16 %v3064, %v3063
    %3081 = vmatprep.subr.bf16.mxu0 0
    %3082 = vmatpush1.bf16.msra.mxu0 %v3065
    %3083 = vmatprep.subr.bf16.mxu0 0
    %3084 = vmatpush1.bf16.msra.mxu0 %v3066
    %3085 = vmatprep.subr.bf16.mxu0 0
    %3086 = vmatpush1.bf16.msra.mxu0 %v3067
    %3087 = vmatprep.subr.bf16.mxu0 0
    %3088 = vmatpush1.bf16.msra.mxu0 %v3068
    %3089 = vmatprep.subr.bf16.mxu0 0
    %3090 = vmatpush1.bf16.msra.mxu0 %v3069
    %3091 = vmatprep.subr.bf16.mxu0 0
    %3092 = vmatpush1.bf16.msra.mxu0 %v3070
    %3093 = vmatprep.subr.bf16.mxu0 0
    %3094 = vmatpush1.bf16.msra.mxu0 %v3071
    %3095 = vmatprep.subr.bf16.mxu0 0
    %3096 = vmatpush1.bf16.msra.mxu0 %v3072
    %3097 = vmatprep.subr.bf16.mxu0 0
    %3098 = vmatpush1.bf16.msra.mxu0 0
    %3099 = vmatprep.subr.bf16.mxu0 0
    %3100 = vmatpush1.bf16.msra.mxu0 0
    %3101 = vmatprep.subr.bf16.mxu0 0
    %3102 = vmatpush1.bf16.msra.mxu0 0
    %3103 = vmatprep.subr.bf16.mxu0 0
    %3104 = vmatpush1.bf16.msra.mxu0 0
    %3105 = vmatprep.subr.bf16.mxu0 0
    %3106 = vmatpush1.bf16.msra.mxu0 0
    %3107 = vmatprep.subr.bf16.mxu0 0
    %3108 = vmatpush1.bf16.msra.mxu0 0
    %3109 = vmatprep.subr.bf16.mxu0 0
    %3110 = vmatpush1.bf16.msra.mxu0 0
    %3111 = vmatprep.subr.bf16.mxu0 0
    %3112 = vmatpush1.bf16.msra.mxu0 0
    %3113 = vmatprep.mubr.bf16.mxu0 0
    %3114 = vmatmul.mubr.bf16.gmra.mrb[0].mxu0 %v3009
    %v3115 = vpop.f32.mrb[0].mxu0
    %v3116 = vadd.f32 %v3031, %v3115
    %v3117 = vpop.f32.mrb[0].mxu0
    %v3118 = vpop.f32.mrb[0].mxu0
    %v3119 = vpop.f32.mrb[0].mxu0
    %3120 = vdwg.mxu0
    %3121 = vst [vmem:[#allocation8] sm:$0xff] %v3116
    // Predicated region
    $region66: #{model_forward.1} parent=1 // pred_check
      _
    $region67: #{model_forward.1} parent=1 // pred_check_branch
      %3123 = sbr.rel (0) target = $region69
    $region68: #{model_forward.1} parent=1 // pred_region
      %s3125 = ssub.s32 128, 128
      %3126 = vsyncadd [#allocation4], %s3125
      %s3128 = sshll.u32 [#allocation8], 4
      %s3129 = int_to_ptr.vmem [resolvable:$true] %s3128
      %3131 = dma.vmem_to_hbm [thread:$0]  %s3129, 128, %s13, [#allocation4]
    $region69: #{model_forward.1} parent=1 // pred_fallthru
      _
    // Predicated region
    $region70: #{model_forward.1} parent=1 // pred_check
      _
    $region71: #{model_forward.1} parent=1 // pred_check_branch
      %3133 = sbr.rel (0) target = $region73
    $region72: #{model_forward.1} parent=1 // pred_region
      %3134 = dma.done [#allocation4], 128
    $region73: #{model_forward.1} parent=1 // pred_fallthru
      _
    %3135 = vsyncpa [#allocation3], 1
    %3136 = vsyncpa [#allocation6], 1
    %3137 = vsyncpa [#allocation4], 1

</llo_original>
